<compile_context>
chip_gen: v7x
topology: tpu7x:2x2x1
jax: 0.10.0
libtpu: 0.0.40
codegen_flags: <defaults>
</compile_context>

<pallas_src>
import math

import numpy as np

import jax
import jax.numpy as jnp
from jax.experimental import pallas as pl
from jax.experimental.pallas import tpu as pltpu


def _round_up(v, m):
    return ((v + m - 1) // m) * m


def _conv_out(size, pad):
    """Output size of a kernel=3 / stride=2 conv along one spatial axis."""
    return (size + 2 * pad - 3) // 2 + 1


# ---------------------------------------------------------------------------
# Fused 4-layer kernel (single pallas_call, no grid; whole problem in VMEM)
# ---------------------------------------------------------------------------
def _fused_block_kernel(a0_ref,
                        sh1_ref, g1_ref, b1_ref,
                        sh2_ref, g2_ref, b2_ref,
                        sh3_ref, g3_ref, b3_ref,
                        sh4_ref, g4_ref, b4_ref,
                        o_ref):
    f32 = jnp.float32

    def conv_relu(a, sh_ref, g_ref, b_ref):
        # One stride-2 3x3 conv + ReLU on a brick-layout activation:
        #   for each row tap di: 0/1 H-gather matmul, then a matmul with the
        #   combined (W-gather x weights) matrix.  f32 accumulation on MXU.
        acc = None
        for di in range(3):                                   # unrolled taps
            rows = jnp.dot(sh_ref[di], a, preferred_element_type=f32)
            contrib = jnp.dot(rows, g_ref[di], preferred_element_type=f32)
            acc = contrib if acc is None else acc + contrib
        return jnp.maximum(acc + b_ref[...], 0.0)             # bias + ReLU

    a = a0_ref[...]                                           # (N*H0, W0*C0)
    a = conv_relu(a, sh1_ref, g1_ref, b1_ref)                 # layer 'a'
    a = conv_relu(a, sh2_ref, g2_ref, b2_ref)                 # layer 'b'
    a = conv_relu(a, sh3_ref, g3_ref, b3_ref)                 # layer 'c'
    o_ref[...] = conv_relu(a, sh4_ref, g4_ref, b4_ref)        # layer 'd' (padded)


# ---------------------------------------------------------------------------
# Trace-time operand builders (tiny numpy / XLA glue)
# ---------------------------------------------------------------------------
def _row_gather(N, H_in, OH, pad, rows_pad=None):
    """Sh[di, n*OH+oh, n*H_in+h] = 1 iff h == 2*oh - pad + di (in range).

    0/1 block-diagonal-over-batch row-gather matrices, one per row tap.
    Rows mapping into the H zero-padding stay all-zero.  Static constants."""
    rows = N * OH
    rows_pad = rows if rows_pad is None else rows_pad
    S = np.zeros((3, rows_pad, N * H_in), np.float32)
    for di in range(3):
        for n in range(N):
            for oh in range(OH):
                h = 2 * oh - pad + di
                if 0 <= h < H_in:
                    S[di, n * OH + oh, n * H_in + h] = 1.0
    return jnp.asarray(S)


def _col_weights(w, b, W_in, OW, pad, cout_pad=None):
    """Fold W-axis gather (incl. zero padding) and conv weights into G.

    G[di, w*Cin+ci, ow*Coutp+co] = sum_dj [w == 2*ow - pad + dj] * W[co,ci,di,dj]
    Also returns the bias broadcast to the output brick layout (1, OW*Coutp)."""
    Cout, Cin = int(w.shape[0]), int(w.shape[1])
    coutp = Cout if cout_pad is None else cout_pad
    P = np.zeros((3, W_in, OW), np.float32)          # placement: [dj, w, ow]
    for dj in range(3):
        for ow in range(OW):
            wi = 2 * ow - pad + dj
            if 0 <= wi < W_in:
                P[dj, wi, ow] = 1.0
    G = jnp.einsum('jwo,kcij->iwcok', jnp.asarray(P), w.astype(jnp.float32))
    if coutp > Cout:
        G = jnp.pad(G, ((0, 0), (0, 0), (0, 0), (0, 0), (0, coutp - Cout)))
    G = G.reshape(3, W_in * Cin, OW * coutp)
    bb = jnp.tile(jnp.pad(b.astype(jnp.float32), (0, coutp - Cout)), OW)
    return G, bb.reshape(1, OW * coutp)


# ---------------------------------------------------------------------------
# Simple_Block forward (NCHW), one fused Pallas kernel
# ---------------------------------------------------------------------------
@jax.jit
def simple_block_forward(x, params):
    N, C0, H0, W0 = x.shape
    pads = (1, 1, 1, 0)
    ws = [params[k]["w"] for k in ("a", "b", "c", "d")]
    bs = [params[k]["b"] for k in ("a", "b", "c", "d")]
    Cs = [C0] + [int(w.shape[0]) for w in ws]

    Hs, Ws = [H0], [W0]
    for p in pads:
        Hs.append(_conv_out(Hs[-1], p))
        Ws.append(_conv_out(Ws[-1], p))

    # Last-layer padding so the single HBM store is a full (8, 128k) tile.
    R4p = max(_round_up(N * Hs[4], 8), 8)
    C4p = _round_up(Cs[4], 128 // math.gcd(Ws[4], 128))
    out_cols = Ws[4] * C4p

    shs, gs, bbs = [], [], []
    for l in range(4):
        rows_pad = R4p if l == 3 else None
        cpad = C4p if l == 3 else None
        shs.append(_row_gather(N, Hs[l], Hs[l + 1], pads[l], rows_pad))
        g, bb = _col_weights(ws[l], bs[l], Ws[l], Ws[l + 1], pads[l], cpad)
        gs.append(g)
        bbs.append(bb)

    # Raw input -> brick layout (N*H0, W0*C0): a single NCHW->NHWC transpose.
    a0 = x.astype(jnp.float32).transpose(0, 2, 3, 1).reshape(N * H0, W0 * C0)

    operands = [a0]
    for l in range(4):
        operands += [shs[l], gs[l], bbs[l]]

    flops = 0
    for l in range(4):
        r_out, r_in = int(shs[l].shape[1]), int(shs[l].shape[2])
        k_in, k_out = int(gs[l].shape[1]), int(gs[l].shape[2])
        flops += 3 * 2 * (r_out * r_in * k_in + r_out * k_in * k_out)
    bytes_accessed = (sum(int(np.prod(a.shape)) * a.dtype.itemsize
                          for a in operands) + R4p * out_cols * 4)

    vmem = pl.BlockSpec(memory_space=pltpu.MemorySpace.VMEM)
    out = pl.pallas_call(
        _fused_block_kernel,
        out_shape=jax.ShapeDtypeStruct((R4p, out_cols), jnp.float32),
        in_specs=[vmem] * len(operands),
        out_specs=vmem,
        cost_estimate=pl.CostEstimate(flops=flops, transcendentals=0,
                                      bytes_accessed=bytes_accessed),
    )(*operands)

    # Unpad the lane-dense result and return NCHW.
    out = out[:N * Hs[4], :].reshape(N, Hs[4], Ws[4], C4p)[..., :Cs[4]]
    return out.transpose(0, 3, 1, 2)


# ---------------------------------------------------------------------------
# Parameters + pure-XLA reference
# ---------------------------------------------------------------------------
def init_simple_block_params(key, nch, nout):
    """Deterministic synthetic init (shapes match the PyTorch module)."""
    specs = [("a", nch, 8), ("b", 8, 16), ("c", 16, 32), ("d", 32, nout)]
    params = {}
    for name, cin, cout in specs:
        key, kw, kb = jax.random.split(key, 3)
        scale = 1.0 / float(np.sqrt(cin * 3 * 3))
        params[name] = {
            "w": jax.random.uniform(kw, (cout, cin, 3, 3), jnp.float32,
                                    minval=-scale, maxval=scale),
            "b": jax.random.uniform(kb, (cout,), jnp.float32,
                                    minval=-scale, maxval=scale),
        }
    return params


def _reference_forward(x, params):
    """Pure-JAX (XLA conv) reference used only for the correctness check."""
    def conv(x, w, b, pad):
        y = jax.lax.conv_general_dilated(
            x, w, window_strides=(2, 2), padding=((pad, pad), (pad, pad)),
            dimension_numbers=("NCHW", "OIHW", "NCHW"),
            precision=jax.lax.Precision.HIGHEST)
        return jnp.maximum(y + b.reshape(1, -1, 1, 1), 0.0)

    x = conv(x, params["a"]["w"], params["a"]["b"], 1)
    x = conv(x, params["b"]["w"], params["b"]["b"], 1)
    x = conv(x, params["c"]["w"], params["c"]["b"], 1)
    x = conv(x, params["d"]["w"], params["d"]["b"], 0)
    return x


if __name__ == "__main__":
    key = jax.random.PRNGKey(0)
    kx, kp = jax.random.split(key)

    # batch=2, nch=4, 32x32 spatial (32 -> 16 -> 8 -> 4 -> 1), nout=6.
    # (32x32 is the smallest "nice" spatial size for which the final
    #  padding-0 conv still has a valid output.)
    nch, nout = 4, 6
    x = jax.random.normal(kx, (2, nch, 32, 32), jnp.float32)
    params = init_simple_block_params(kp, nch, nout)

    out = jax.block_until_ready(simple_block_forward(x, params))

    assert out.shape == (2, nout, 1, 1), out.shape
    assert bool(jnp.all(out >= 0.0))          # ReLU output is non-negative

    # correctness vs. a pure-XLA conv reference
    ref = jax.block_until_ready(_reference_forward(x, params))
    np.testing.assert_allclose(np.asarray(out), np.asarray(ref),
                               rtol=5e-3, atol=5e-3)

    print("KERNEL_OK")
</pallas_src>

<mosaic_0001>
module attributes {stable_mosaic.version = 11 : i64} {
  func.func @_fused_block_kernel(%arg0: memref<64x128xf32, #tpu.memory_space<vmem>>, %arg1: memref<3x32x64xf32, #tpu.memory_space<vmem>>, %arg2: memref<3x128x128xf32, #tpu.memory_space<vmem>>, %arg3: memref<1x128xf32, #tpu.memory_space<vmem>>, %arg4: memref<3x16x32xf32, #tpu.memory_space<vmem>>, %arg5: memref<3x128x128xf32, #tpu.memory_space<vmem>>, %arg6: memref<1x128xf32, #tpu.memory_space<vmem>>, %arg7: memref<3x8x16xf32, #tpu.memory_space<vmem>>, %arg8: memref<3x128x128xf32, #tpu.memory_space<vmem>>, %arg9: memref<1x128xf32, #tpu.memory_space<vmem>>, %arg10: memref<3x8x8xf32, #tpu.memory_space<vmem>>, %arg11: memref<3x128x128xf32, #tpu.memory_space<vmem>>, %arg12: memref<1x128xf32, #tpu.memory_space<vmem>>, %arg13: memref<8x128xf32, #tpu.memory_space<vmem>>) attributes {dimension_semantics = [], scalar_prefetch = 0 : i64, scratch_operands = 0 : i64, tpu.core_type = #tpu.core_type<tc>} {
    %c0 = arith.constant 0 : index
    %c0_0 = arith.constant 0 : index
    %0 = vector.load %arg0[%c0, %c0_0] : memref<64x128xf32, #tpu.memory_space<vmem>>, vector<64x128xf32>
    %c0_1 = arith.constant 0 : index
    %c0_2 = arith.constant 0 : index
    %c0_3 = arith.constant 0 : index
    %1 = vector.load %arg1[%c0_1, %c0_2, %c0_3] : memref<3x32x64xf32, #tpu.memory_space<vmem>>, vector<1x32x64xf32>
    %2 = vector.shape_cast %1 : vector<1x32x64xf32> to vector<32x64xf32>
    %cst = arith.constant dense<0.000000e+00> : vector<32x128xf32>
    %3 = tpu.matmul %2, %0, %cst {dimension_numbers = #tpu.dot_dimension_numbers<[1], [0], [0], [1], [0, 0, 1, 1], [], []>} : vector<32x64xf32>, vector<64x128xf32>, vector<32x128xf32> -> vector<32x128xf32>
    %c0_4 = arith.constant 0 : index
    %c0_5 = arith.constant 0 : index
    %c0_6 = arith.constant 0 : index
    %4 = vector.load %arg2[%c0_4, %c0_5, %c0_6] : memref<3x128x128xf32, #tpu.memory_space<vmem>>, vector<1x128x128xf32>
    %5 = vector.shape_cast %4 : vector<1x128x128xf32> to vector<128x128xf32>
    %cst_7 = arith.constant dense<0.000000e+00> : vector<32x128xf32>
    %6 = tpu.matmul %3, %5, %cst_7 {dimension_numbers = #tpu.dot_dimension_numbers<[1], [0], [0], [1], [0, 0, 1, 1], [], []>} : vector<32x128xf32>, vector<128x128xf32>, vector<32x128xf32> -> vector<32x128xf32>
    %c1 = arith.constant 1 : index
    %c0_8 = arith.constant 0 : index
    %c0_9 = arith.constant 0 : index
    %7 = vector.load %arg1[%c1, %c0_8, %c0_9] : memref<3x32x64xf32, #tpu.memory_space<vmem>>, vector<1x32x64xf32>
    %8 = vector.shape_cast %7 : vector<1x32x64xf32> to vector<32x64xf32>
    %cst_10 = arith.constant dense<0.000000e+00> : vector<32x128xf32>
    %9 = tpu.matmul %8, %0, %cst_10 {dimension_numbers = #tpu.dot_dimension_numbers<[1], [0], [0], [1], [0, 0, 1, 1], [], []>} : vector<32x64xf32>, vector<64x128xf32>, vector<32x128xf32> -> vector<32x128xf32>
    %c1_11 = arith.constant 1 : index
    %c0_12 = arith.constant 0 : index
    %c0_13 = arith.constant 0 : index
    %10 = vector.load %arg2[%c1_11, %c0_12, %c0_13] : memref<3x128x128xf32, #tpu.memory_space<vmem>>, vector<1x128x128xf32>
    %11 = vector.shape_cast %10 : vector<1x128x128xf32> to vector<128x128xf32>
    %cst_14 = arith.constant dense<0.000000e+00> : vector<32x128xf32>
    %12 = tpu.matmul %9, %11, %cst_14 {dimension_numbers = #tpu.dot_dimension_numbers<[1], [0], [0], [1], [0, 0, 1, 1], [], []>} : vector<32x128xf32>, vector<128x128xf32>, vector<32x128xf32> -> vector<32x128xf32>
    %13 = arith.addf %6, %12 : vector<32x128xf32>
    %c2 = arith.constant 2 : index
    %c0_15 = arith.constant 0 : index
    %c0_16 = arith.constant 0 : index
    %14 = vector.load %arg1[%c2, %c0_15, %c0_16] : memref<3x32x64xf32, #tpu.memory_space<vmem>>, vector<1x32x64xf32>
    %15 = vector.shape_cast %14 : vector<1x32x64xf32> to vector<32x64xf32>
    %cst_17 = arith.constant dense<0.000000e+00> : vector<32x128xf32>
    %16 = tpu.matmul %15, %0, %cst_17 {dimension_numbers = #tpu.dot_dimension_numbers<[1], [0], [0], [1], [0, 0, 1, 1], [], []>} : vector<32x64xf32>, vector<64x128xf32>, vector<32x128xf32> -> vector<32x128xf32>
    %c2_18 = arith.constant 2 : index
    %c0_19 = arith.constant 0 : index
    %c0_20 = arith.constant 0 : index
    %17 = vector.load %arg2[%c2_18, %c0_19, %c0_20] : memref<3x128x128xf32, #tpu.memory_space<vmem>>, vector<1x128x128xf32>
    %18 = vector.shape_cast %17 : vector<1x128x128xf32> to vector<128x128xf32>
    %cst_21 = arith.constant dense<0.000000e+00> : vector<32x128xf32>
    %19 = tpu.matmul %16, %18, %cst_21 {dimension_numbers = #tpu.dot_dimension_numbers<[1], [0], [0], [1], [0, 0, 1, 1], [], []>} : vector<32x128xf32>, vector<128x128xf32>, vector<32x128xf32> -> vector<32x128xf32>
    %20 = arith.addf %13, %19 : vector<32x128xf32>
    %c0_22 = arith.constant 0 : index
    %c0_23 = arith.constant 0 : index
    %21 = vector.load %arg3[%c0_22, %c0_23] : memref<1x128xf32, #tpu.memory_space<vmem>>, vector<1x128xf32>
    %22 = vector.broadcast %21 : vector<1x128xf32> to vector<32x128xf32>
    %23 = arith.addf %20, %22 : vector<32x128xf32>
    %cst_24 = arith.constant 0.000000e+00 : f32
    %24 = vector.broadcast %cst_24 : f32 to vector<32x128xf32>
    %25 = arith.maximumf %23, %24 : vector<32x128xf32>
    %c0_25 = arith.constant 0 : index
    %c0_26 = arith.constant 0 : index
    %c0_27 = arith.constant 0 : index
    %26 = vector.load %arg4[%c0_25, %c0_26, %c0_27] : memref<3x16x32xf32, #tpu.memory_space<vmem>>, vector<1x16x32xf32>
    %27 = vector.shape_cast %26 : vector<1x16x32xf32> to vector<16x32xf32>
    %cst_28 = arith.constant dense<0.000000e+00> : vector<16x128xf32>
    %28 = tpu.matmul %27, %25, %cst_28 {dimension_numbers = #tpu.dot_dimension_numbers<[1], [0], [0], [1], [0, 0, 1, 1], [], []>} : vector<16x32xf32>, vector<32x128xf32>, vector<16x128xf32> -> vector<16x128xf32>
    %c0_29 = arith.constant 0 : index
    %c0_30 = arith.constant 0 : index
    %c0_31 = arith.constant 0 : index
    %29 = vector.load %arg5[%c0_29, %c0_30, %c0_31] : memref<3x128x128xf32, #tpu.memory_space<vmem>>, vector<1x128x128xf32>
    %30 = vector.shape_cast %29 : vector<1x128x128xf32> to vector<128x128xf32>
    %cst_32 = arith.constant dense<0.000000e+00> : vector<16x128xf32>
    %31 = tpu.matmul %28, %30, %cst_32 {dimension_numbers = #tpu.dot_dimension_numbers<[1], [0], [0], [1], [0, 0, 1, 1], [], []>} : vector<16x128xf32>, vector<128x128xf32>, vector<16x128xf32> -> vector<16x128xf32>
    %c1_33 = arith.constant 1 : index
    %c0_34 = arith.constant 0 : index
    %c0_35 = arith.constant 0 : index
    %32 = vector.load %arg4[%c1_33, %c0_34, %c0_35] : memref<3x16x32xf32, #tpu.memory_space<vmem>>, vector<1x16x32xf32>
    %33 = vector.shape_cast %32 : vector<1x16x32xf32> to vector<16x32xf32>
    %cst_36 = arith.constant dense<0.000000e+00> : vector<16x128xf32>
    %34 = tpu.matmul %33, %25, %cst_36 {dimension_numbers = #tpu.dot_dimension_numbers<[1], [0], [0], [1], [0, 0, 1, 1], [], []>} : vector<16x32xf32>, vector<32x128xf32>, vector<16x128xf32> -> vector<16x128xf32>
    %c1_37 = arith.constant 1 : index
    %c0_38 = arith.constant 0 : index
    %c0_39 = arith.constant 0 : index
    %35 = vector.load %arg5[%c1_37, %c0_38, %c0_39] : memref<3x128x128xf32, #tpu.memory_space<vmem>>, vector<1x128x128xf32>
    %36 = vector.shape_cast %35 : vector<1x128x128xf32> to vector<128x128xf32>
    %cst_40 = arith.constant dense<0.000000e+00> : vector<16x128xf32>
    %37 = tpu.matmul %34, %36, %cst_40 {dimension_numbers = #tpu.dot_dimension_numbers<[1], [0], [0], [1], [0, 0, 1, 1], [], []>} : vector<16x128xf32>, vector<128x128xf32>, vector<16x128xf32> -> vector<16x128xf32>
    %38 = arith.addf %31, %37 : vector<16x128xf32>
    %c2_41 = arith.constant 2 : index
    %c0_42 = arith.constant 0 : index
    %c0_43 = arith.constant 0 : index
    %39 = vector.load %arg4[%c2_41, %c0_42, %c0_43] : memref<3x16x32xf32, #tpu.memory_space<vmem>>, vector<1x16x32xf32>
    %40 = vector.shape_cast %39 : vector<1x16x32xf32> to vector<16x32xf32>
    %cst_44 = arith.constant dense<0.000000e+00> : vector<16x128xf32>
    %41 = tpu.matmul %40, %25, %cst_44 {dimension_numbers = #tpu.dot_dimension_numbers<[1], [0], [0], [1], [0, 0, 1, 1], [], []>} : vector<16x32xf32>, vector<32x128xf32>, vector<16x128xf32> -> vector<16x128xf32>
    %c2_45 = arith.constant 2 : index
    %c0_46 = arith.constant 0 : index
    %c0_47 = arith.constant 0 : index
    %42 = vector.load %arg5[%c2_45, %c0_46, %c0_47] : memref<3x128x128xf32, #tpu.memory_space<vmem>>, vector<1x128x128xf32>
    %43 = vector.shape_cast %42 : vector<1x128x128xf32> to vector<128x128xf32>
    %cst_48 = arith.constant dense<0.000000e+00> : vector<16x128xf32>
    %44 = tpu.matmul %41, %43, %cst_48 {dimension_numbers = #tpu.dot_dimension_numbers<[1], [0], [0], [1], [0, 0, 1, 1], [], []>} : vector<16x128xf32>, vector<128x128xf32>, vector<16x128xf32> -> vector<16x128xf32>
    %45 = arith.addf %38, %44 : vector<16x128xf32>
    %c0_49 = arith.constant 0 : index
    %c0_50 = arith.constant 0 : index
    %46 = vector.load %arg6[%c0_49, %c0_50] : memref<1x128xf32, #tpu.memory_space<vmem>>, vector<1x128xf32>
    %47 = vector.broadcast %46 : vector<1x128xf32> to vector<16x128xf32>
    %48 = arith.addf %45, %47 : vector<16x128xf32>
    %cst_51 = arith.constant 0.000000e+00 : f32
    %49 = vector.broadcast %cst_51 : f32 to vector<16x128xf32>
    %50 = arith.maximumf %48, %49 : vector<16x128xf32>
    %c0_52 = arith.constant 0 : index
    %c0_53 = arith.constant 0 : index
    %c0_54 = arith.constant 0 : index
    %51 = vector.load %arg7[%c0_52, %c0_53, %c0_54] : memref<3x8x16xf32, #tpu.memory_space<vmem>>, vector<1x8x16xf32>
    %52 = vector.shape_cast %51 : vector<1x8x16xf32> to vector<8x16xf32>
    %cst_55 = arith.constant dense<0.000000e+00> : vector<8x128xf32>
    %53 = tpu.matmul %52, %50, %cst_55 {dimension_numbers = #tpu.dot_dimension_numbers<[1], [0], [0], [1], [0, 0, 1, 1], [], []>} : vector<8x16xf32>, vector<16x128xf32>, vector<8x128xf32> -> vector<8x128xf32>
    %c0_56 = arith.constant 0 : index
    %c0_57 = arith.constant 0 : index
    %c0_58 = arith.constant 0 : index
    %54 = vector.load %arg8[%c0_56, %c0_57, %c0_58] : memref<3x128x128xf32, #tpu.memory_space<vmem>>, vector<1x128x128xf32>
    %55 = vector.shape_cast %54 : vector<1x128x128xf32> to vector<128x128xf32>
    %cst_59 = arith.constant dense<0.000000e+00> : vector<8x128xf32>
    %56 = tpu.matmul %53, %55, %cst_59 {dimension_numbers = #tpu.dot_dimension_numbers<[1], [0], [0], [1], [0, 0, 1, 1], [], []>} : vector<8x128xf32>, vector<128x128xf32>, vector<8x128xf32> -> vector<8x128xf32>
    %c1_60 = arith.constant 1 : index
    %c0_61 = arith.constant 0 : index
    %c0_62 = arith.constant 0 : index
    %57 = vector.load %arg7[%c1_60, %c0_61, %c0_62] : memref<3x8x16xf32, #tpu.memory_space<vmem>>, vector<1x8x16xf32>
    %58 = vector.shape_cast %57 : vector<1x8x16xf32> to vector<8x16xf32>
    %cst_63 = arith.constant dense<0.000000e+00> : vector<8x128xf32>
    %59 = tpu.matmul %58, %50, %cst_63 {dimension_numbers = #tpu.dot_dimension_numbers<[1], [0], [0], [1], [0, 0, 1, 1], [], []>} : vector<8x16xf32>, vector<16x128xf32>, vector<8x128xf32> -> vector<8x128xf32>
    %c1_64 = arith.constant 1 : index
    %c0_65 = arith.constant 0 : index
    %c0_66 = arith.constant 0 : index
    %60 = vector.load %arg8[%c1_64, %c0_65, %c0_66] : memref<3x128x128xf32, #tpu.memory_space<vmem>>, vector<1x128x128xf32>
    %61 = vector.shape_cast %60 : vector<1x128x128xf32> to vector<128x128xf32>
    %cst_67 = arith.constant dense<0.000000e+00> : vector<8x128xf32>
    %62 = tpu.matmul %59, %61, %cst_67 {dimension_numbers = #tpu.dot_dimension_numbers<[1], [0], [0], [1], [0, 0, 1, 1], [], []>} : vector<8x128xf32>, vector<128x128xf32>, vector<8x128xf32> -> vector<8x128xf32>
    %63 = arith.addf %56, %62 : vector<8x128xf32>
    %c2_68 = arith.constant 2 : index
    %c0_69 = arith.constant 0 : index
    %c0_70 = arith.constant 0 : index
    %64 = vector.load %arg7[%c2_68, %c0_69, %c0_70] : memref<3x8x16xf32, #tpu.memory_space<vmem>>, vector<1x8x16xf32>
    %65 = vector.shape_cast %64 : vector<1x8x16xf32> to vector<8x16xf32>
    %cst_71 = arith.constant dense<0.000000e+00> : vector<8x128xf32>
    %66 = tpu.matmul %65, %50, %cst_71 {dimension_numbers = #tpu.dot_dimension_numbers<[1], [0], [0], [1], [0, 0, 1, 1], [], []>} : vector<8x16xf32>, vector<16x128xf32>, vector<8x128xf32> -> vector<8x128xf32>
    %c2_72 = arith.constant 2 : index
    %c0_73 = arith.constant 0 : index
    %c0_74 = arith.constant 0 : index
    %67 = vector.load %arg8[%c2_72, %c0_73, %c0_74] : memref<3x128x128xf32, #tpu.memory_space<vmem>>, vector<1x128x128xf32>
    %68 = vector.shape_cast %67 : vector<1x128x128xf32> to vector<128x128xf32>
    %cst_75 = arith.constant dense<0.000000e+00> : vector<8x128xf32>
    %69 = tpu.matmul %66, %68, %cst_75 {dimension_numbers = #tpu.dot_dimension_numbers<[1], [0], [0], [1], [0, 0, 1, 1], [], []>} : vector<8x128xf32>, vector<128x128xf32>, vector<8x128xf32> -> vector<8x128xf32>
    %70 = arith.addf %63, %69 : vector<8x128xf32>
    %c0_76 = arith.constant 0 : index
    %c0_77 = arith.constant 0 : index
    %71 = vector.load %arg9[%c0_76, %c0_77] : memref<1x128xf32, #tpu.memory_space<vmem>>, vector<1x128xf32>
    %72 = vector.broadcast %71 : vector<1x128xf32> to vector<8x128xf32>
    %73 = arith.addf %70, %72 : vector<8x128xf32>
    %cst_78 = arith.constant 0.000000e+00 : f32
    %74 = vector.broadcast %cst_78 : f32 to vector<8x128xf32>
    %75 = arith.maximumf %73, %74 : vector<8x128xf32>
    %c0_79 = arith.constant 0 : index
    %c0_80 = arith.constant 0 : index
    %c0_81 = arith.constant 0 : index
    %76 = vector.load %arg10[%c0_79, %c0_80, %c0_81] : memref<3x8x8xf32, #tpu.memory_space<vmem>>, vector<1x8x8xf32>
    %77 = vector.shape_cast %76 : vector<1x8x8xf32> to vector<8x8xf32>
    %cst_82 = arith.constant dense<0.000000e+00> : vector<8x128xf32>
    %78 = tpu.matmul %77, %75, %cst_82 {dimension_numbers = #tpu.dot_dimension_numbers<[1], [0], [0], [1], [0, 0, 1, 1], [], []>} : vector<8x8xf32>, vector<8x128xf32>, vector<8x128xf32> -> vector<8x128xf32>
    %c0_83 = arith.constant 0 : index
    %c0_84 = arith.constant 0 : index
    %c0_85 = arith.constant 0 : index
    %79 = vector.load %arg11[%c0_83, %c0_84, %c0_85] : memref<3x128x128xf32, #tpu.memory_space<vmem>>, vector<1x128x128xf32>
    %80 = vector.shape_cast %79 : vector<1x128x128xf32> to vector<128x128xf32>
    %cst_86 = arith.constant dense<0.000000e+00> : vector<8x128xf32>
    %81 = tpu.matmul %78, %80, %cst_86 {dimension_numbers = #tpu.dot_dimension_numbers<[1], [0], [0], [1], [0, 0, 1, 1], [], []>} : vector<8x128xf32>, vector<128x128xf32>, vector<8x128xf32> -> vector<8x128xf32>
    %c1_87 = arith.constant 1 : index
    %c0_88 = arith.constant 0 : index
    %c0_89 = arith.constant 0 : index
    %82 = vector.load %arg10[%c1_87, %c0_88, %c0_89] : memref<3x8x8xf32, #tpu.memory_space<vmem>>, vector<1x8x8xf32>
    %83 = vector.shape_cast %82 : vector<1x8x8xf32> to vector<8x8xf32>
    %cst_90 = arith.constant dense<0.000000e+00> : vector<8x128xf32>
    %84 = tpu.matmul %83, %75, %cst_90 {dimension_numbers = #tpu.dot_dimension_numbers<[1], [0], [0], [1], [0, 0, 1, 1], [], []>} : vector<8x8xf32>, vector<8x128xf32>, vector<8x128xf32> -> vector<8x128xf32>
    %c1_91 = arith.constant 1 : index
    %c0_92 = arith.constant 0 : index
    %c0_93 = arith.constant 0 : index
    %85 = vector.load %arg11[%c1_91, %c0_92, %c0_93] : memref<3x128x128xf32, #tpu.memory_space<vmem>>, vector<1x128x128xf32>
    %86 = vector.shape_cast %85 : vector<1x128x128xf32> to vector<128x128xf32>
    %cst_94 = arith.constant dense<0.000000e+00> : vector<8x128xf32>
    %87 = tpu.matmul %84, %86, %cst_94 {dimension_numbers = #tpu.dot_dimension_numbers<[1], [0], [0], [1], [0, 0, 1, 1], [], []>} : vector<8x128xf32>, vector<128x128xf32>, vector<8x128xf32> -> vector<8x128xf32>
    %88 = arith.addf %81, %87 : vector<8x128xf32>
    %c2_95 = arith.constant 2 : index
    %c0_96 = arith.constant 0 : index
    %c0_97 = arith.constant 0 : index
    %89 = vector.load %arg10[%c2_95, %c0_96, %c0_97] : memref<3x8x8xf32, #tpu.memory_space<vmem>>, vector<1x8x8xf32>
    %90 = vector.shape_cast %89 : vector<1x8x8xf32> to vector<8x8xf32>
    %cst_98 = arith.constant dense<0.000000e+00> : vector<8x128xf32>
    %91 = tpu.matmul %90, %75, %cst_98 {dimension_numbers = #tpu.dot_dimension_numbers<[1], [0], [0], [1], [0, 0, 1, 1], [], []>} : vector<8x8xf32>, vector<8x128xf32>, vector<8x128xf32> -> vector<8x128xf32>
    %c2_99 = arith.constant 2 : index
    %c0_100 = arith.constant 0 : index
    %c0_101 = arith.constant 0 : index
    %92 = vector.load %arg11[%c2_99, %c0_100, %c0_101] : memref<3x128x128xf32, #tpu.memory_space<vmem>>, vector<1x128x128xf32>
    %93 = vector.shape_cast %92 : vector<1x128x128xf32> to vector<128x128xf32>
    %cst_102 = arith.constant dense<0.000000e+00> : vector<8x128xf32>
    %94 = tpu.matmul %91, %93, %cst_102 {dimension_numbers = #tpu.dot_dimension_numbers<[1], [0], [0], [1], [0, 0, 1, 1], [], []>} : vector<8x128xf32>, vector<128x128xf32>, vector<8x128xf32> -> vector<8x128xf32>
    %95 = arith.addf %88, %94 : vector<8x128xf32>
    %c0_103 = arith.constant 0 : index
    %c0_104 = arith.constant 0 : index
    %96 = vector.load %arg12[%c0_103, %c0_104] : memref<1x128xf32, #tpu.memory_space<vmem>>, vector<1x128xf32>
    %97 = vector.broadcast %96 : vector<1x128xf32> to vector<8x128xf32>
    %98 = arith.addf %95, %97 : vector<8x128xf32>
    %cst_105 = arith.constant 0.000000e+00 : f32
    %99 = vector.broadcast %cst_105 : f32 to vector<8x128xf32>
    %100 = arith.maximumf %98, %99 : vector<8x128xf32>
    %c0_106 = arith.constant 0 : index
    %c0_107 = arith.constant 0 : index
    %101 = vector.load %arg13[%c0_106, %c0_107] : memref<8x128xf32, #tpu.memory_space<vmem>>, vector<8x128xf32>
    tpu.vector_store %arg13[%c0_106, %c0_107], %100 {strides = array<i32>} : memref<8x128xf32, #tpu.memory_space<vmem>>, vector<8x128xf32>,
    return
  }
}

</mosaic_0001>

<llo_original>
// kernel: tile.19
$region0: #{tile.19}
  #allocation0 [shape = 's32[1]{0}', space=sflag, size = 0x4, scoped, tag = 'scoped memory for tile.19']
  %s0 = inlined_call_operand.vmem [shape: f32[8], index: 0, kind: input, shape index: {}]
  %s1 = inlined_call_operand.vmem [shape: f32[16,8], index: 1, kind: output, shape index: {}]
  // Predicated region
  $region2: #{tile.19} parent=0 // pred_check
    _
  $region3: #{tile.19} parent=0 // pred_check_branch
    %3 = sbr.rel (0) target = $region5
  $region4: #{tile.19} parent=0 // pred_region
    _
  $region5: #{tile.19} parent=0 // pred_fallthru
    _
  %v4 = vld [vmem:[%s0] ss:$0 sm:$0xff]
  %5 = vst [vmem:[%s1] sm:$0xff] %v4
  %s6 = scalar_lea.vmem %s1, 8
  %7 = vst [vmem:[%s6] sm:$0xff] %v4

// kernel: tile.20
$region0: #{tile.20}
  %s0 = inlined_call_operand.vmem [shape: f32[16,8], index: 0, kind: input, shape index: {}]
  %s1 = inlined_call_operand.vmem [shape: f32[1,128], index: 1, kind: output, shape index: {}]
  $region1: #{tile.20} parent=0
    #allocation0 [shape = 'u8[4096]{0}', space=vmem, size = 0x1000, scoped, tag = 'scoped mem for output reshape']
    %v2 = vld [vmem:[%s0] sm:$0x1]
    %vm3 = vcmask 64512
    %4 = vst.msk [vmem:[#allocation0] sm:$0x1] %vm3, %v2
    %s5 = scalar_lea.vmem %s0, 15
    %v6 = vld [vmem:[%s5] sm:$0x1]
    %7 = vrot.lane.b32.xlu0 %v6, 120
    %v8 = vpop.permute.xlu0 %7
    %vm9 = vcmask 1048512
    %10 = vst.msk [vmem:[#allocation0] sm:$0x1] %vm9, %v8
    %s11 = scalar_lea.vmem %s0, 14
    %v12 = vld [vmem:[%s11] sm:$0x1]
    %13 = vrot.lane.b32.xlu0 %v12, 112
    %v14 = vpop.permute.xlu0 %13
    %vm15 = vcmask 982912
    %16 = vst.msk [vmem:[#allocation0] sm:$0x1] %vm15, %v14
    %s17 = scalar_lea.vmem %s0, 13
    %v18 = vld [vmem:[%s17] sm:$0x1]
    %19 = vrot.lane.b32.xlu0 %v18, 104
    %v20 = vpop.permute.xlu0 %19
    %vm21 = vcmask 917312
    %22 = vst.msk [vmem:[#allocation0] sm:$0x1] %vm21, %v20
    %s23 = scalar_lea.vmem %s0, 12
    %v24 = vld [vmem:[%s23] sm:$0x1]
    %25 = vrot.lane.b32.xlu0 %v24, 96
    %v26 = vpop.permute.xlu0 %25
    %vm27 = vcmask 851712
    %28 = vst.msk [vmem:[#allocation0] sm:$0x1] %vm27, %v26
    %s29 = scalar_lea.vmem %s0, 11
    %v30 = vld [vmem:[%s29] sm:$0x1]
    %31 = vrot.lane.b32.xlu0 %v30, 88
    %v32 = vpop.permute.xlu0 %31
    %vm33 = vcmask 786112
    %34 = vst.msk [vmem:[#allocation0] sm:$0x1] %vm33, %v32
    %s35 = scalar_lea.vmem %s0, 10
    %v36 = vld [vmem:[%s35] sm:$0x1]
    %37 = vrot.lane.b32.xlu0 %v36, 80
    %v38 = vpop.permute.xlu0 %37
    %vm39 = vcmask 720512
    %40 = vst.msk [vmem:[#allocation0] sm:$0x1] %vm39, %v38
    %s41 = scalar_lea.vmem %s0, 9
    %v42 = vld [vmem:[%s41] sm:$0x1]
    %43 = vrot.lane.b32.xlu0 %v42, 72
    %v44 = vpop.permute.xlu0 %43
    %vm45 = vcmask 654912
    %46 = vst.msk [vmem:[#allocation0] sm:$0x1] %vm45, %v44
    %s47 = scalar_lea.vmem %s0, 8
    %v48 = vld [vmem:[%s47] sm:$0x1]
    %49 = vrot.lane.b32.xlu0 %v48, 64
    %v50 = vpop.permute.xlu0 %49
    %vm51 = vcmask 589312
    %52 = vst.msk [vmem:[#allocation0] sm:$0x1] %vm51, %v50
    %s53 = scalar_lea.vmem %s0, 7
    %v54 = vld [vmem:[%s53] sm:$0x1]
    %55 = vrot.lane.b32.xlu0 %v54, 56
    %v56 = vpop.permute.xlu0 %55
    %vm57 = vcmask 523712
    %58 = vst.msk [vmem:[#allocation0] sm:$0x1] %vm57, %v56
    %s59 = scalar_lea.vmem %s0, 6
    %v60 = vld [vmem:[%s59] sm:$0x1]
    %61 = vrot.lane.b32.xlu0 %v60, 48
    %v62 = vpop.permute.xlu0 %61
    %vm63 = vcmask 458112
    %64 = vst.msk [vmem:[#allocation0] sm:$0x1] %vm63, %v62
    %s65 = scalar_lea.vmem %s0, 5
    %v66 = vld [vmem:[%s65] sm:$0x1]
    %67 = vrot.lane.b32.xlu0 %v66, 40
    %v68 = vpop.permute.xlu0 %67
    %vm69 = vcmask 392512
    %70 = vst.msk [vmem:[#allocation0] sm:$0x1] %vm69, %v68
    %s71 = scalar_lea.vmem %s0, 4
    %v72 = vld [vmem:[%s71] sm:$0x1]
    %73 = vrot.lane.b32.xlu0 %v72, 32
    %v74 = vpop.permute.xlu0 %73
    %vm75 = vcmask 326912
    %76 = vst.msk [vmem:[#allocation0] sm:$0x1] %vm75, %v74
    %s77 = scalar_lea.vmem %s0, 3
    %v78 = vld [vmem:[%s77] sm:$0x1]
    %79 = vrot.lane.b32.xlu0 %v78, 24
    %v80 = vpop.permute.xlu0 %79
    %vm81 = vcmask 261312
    %82 = vst.msk [vmem:[#allocation0] sm:$0x1] %vm81, %v80
    %s83 = scalar_lea.vmem %s0, 2
    %v84 = vld [vmem:[%s83] sm:$0x1]
    %85 = vrot.lane.b32.xlu0 %v84, 16
    %v86 = vpop.permute.xlu0 %85
    %vm87 = vcmask 195712
    %88 = vst.msk [vmem:[#allocation0] sm:$0x1] %vm87, %v86
    %s89 = scalar_lea.vmem %s0, 1
    %v90 = vld [vmem:[%s89] sm:$0x1]
    %91 = vrot.lane.b32.xlu0 %v90, 8
    %v92 = vpop.permute.xlu0 %91
    %vm93 = vcmask 130112
    %94 = vst.msk [vmem:[#allocation0] sm:$0x1] %vm93, %v92
    %s96 = sshllo.u32 0, 1
    %v98 = vld [vmem:[#allocation0] sm:%s96]
    %s99 = sshllo.u32 0, 1
    %100 = vst [vmem:[%s1] sm:%s99] %v98

// kernel: tile.24
$region0: #{tile.24}
  #allocation0 [shape = 's32[1]{0}', space=sflag, size = 0x4, scoped, tag = 'scoped memory for tile.24']
  %s0 = inlined_call_operand.vmem [shape: f32[16], index: 0, kind: input, shape index: {}]
  %s1 = inlined_call_operand.vmem [shape: f32[8,16], index: 1, kind: output, shape index: {}]
  // Predicated region
  $region2: #{tile.24} parent=0 // pred_check
    _
  $region3: #{tile.24} parent=0 // pred_check_branch
    %3 = sbr.rel (0) target = $region5
  $region4: #{tile.24} parent=0 // pred_region
    _
  $region5: #{tile.24} parent=0 // pred_fallthru
    _
  %v4 = vld [vmem:[%s0] ss:$0 sm:$0xff]
  %5 = vst [vmem:[%s1] sm:$0xff] %v4

// kernel: tile.25
$region0: #{tile.25}
  %s0 = inlined_call_operand.vmem [shape: f32[8,16], index: 0, kind: input, shape index: {}]
  %s1 = inlined_call_operand.vmem [shape: f32[1,128], index: 1, kind: output, shape index: {}]
  $region1: #{tile.25} parent=0
    #allocation0 [shape = 'u8[4096]{0}', space=vmem, size = 0x1000, scoped, tag = 'scoped mem for output reshape']
    %v2 = vld [vmem:[%s0] sm:$0x1]
    %vm3 = vcmask 130048
    %4 = vst.msk [vmem:[#allocation0] sm:$0x1] %vm3, %v2
    %s5 = scalar_lea.vmem %s0, 7
    %v6 = vld [vmem:[%s5] sm:$0x1]
    %7 = vrot.lane.b32.xlu0 %v6, 112
    %v8 = vpop.permute.xlu0 %7
    %vm9 = vcmask 1048448
    %10 = vst.msk [vmem:[#allocation0] sm:$0x1] %vm9, %v8
    %s11 = scalar_lea.vmem %s0, 6
    %v12 = vld [vmem:[%s11] sm:$0x1]
    %13 = vrot.lane.b32.xlu0 %v12, 96
    %v14 = vpop.permute.xlu0 %13
    %vm15 = vcmask 917248
    %16 = vst.msk [vmem:[#allocation0] sm:$0x1] %vm15, %v14
    %s17 = scalar_lea.vmem %s0, 5
    %v18 = vld [vmem:[%s17] sm:$0x1]
    %19 = vrot.lane.b32.xlu0 %v18, 80
    %v20 = vpop.permute.xlu0 %19
    %vm21 = vcmask 786048
    %22 = vst.msk [vmem:[#allocation0] sm:$0x1] %vm21, %v20
    %s23 = scalar_lea.vmem %s0, 4
    %v24 = vld [vmem:[%s23] sm:$0x1]
    %25 = vrot.lane.b32.xlu0 %v24, 64
    %v26 = vpop.permute.xlu0 %25
    %vm27 = vcmask 654848
    %28 = vst.msk [vmem:[#allocation0] sm:$0x1] %vm27, %v26
    %s29 = scalar_lea.vmem %s0, 3
    %v30 = vld [vmem:[%s29] sm:$0x1]
    %31 = vrot.lane.b32.xlu0 %v30, 48
    %v32 = vpop.permute.xlu0 %31
    %vm33 = vcmask 523648
    %34 = vst.msk [vmem:[#allocation0] sm:$0x1] %vm33, %v32
    %s35 = scalar_lea.vmem %s0, 2
    %v36 = vld [vmem:[%s35] sm:$0x1]
    %37 = vrot.lane.b32.xlu0 %v36, 32
    %v38 = vpop.permute.xlu0 %37
    %vm39 = vcmask 392448
    %40 = vst.msk [vmem:[#allocation0] sm:$0x1] %vm39, %v38
    %s41 = scalar_lea.vmem %s0, 1
    %v42 = vld [vmem:[%s41] sm:$0x1]
    %43 = vrot.lane.b32.xlu0 %v42, 16
    %v44 = vpop.permute.xlu0 %43
    %vm45 = vcmask 261248
    %46 = vst.msk [vmem:[#allocation0] sm:$0x1] %vm45, %v44
    %s48 = sshllo.u32 0, 1
    %v50 = vld [vmem:[#allocation0] sm:%s48]
    %s51 = sshllo.u32 0, 1
    %52 = vst [vmem:[%s1] sm:%s51] %v50

// kernel: tile.29
$region0: #{tile.29}
  #allocation0 [shape = 's32[1]{0}', space=sflag, size = 0x4, scoped, tag = 'scoped memory for tile.29']
  %s0 = inlined_call_operand.vmem [shape: f32[32], index: 0, kind: input, shape index: {}]
  %s1 = inlined_call_operand.vmem [shape: f32[4,32], index: 1, kind: output, shape index: {}]
  // Predicated region
  $region2: #{tile.29} parent=0 // pred_check
    _
  $region3: #{tile.29} parent=0 // pred_check_branch
    %3 = sbr.rel (0) target = $region5
  $region4: #{tile.29} parent=0 // pred_region
    _
  $region5: #{tile.29} parent=0 // pred_fallthru
    _
  %v4 = vld [vmem:[%s0] ss:$0 sm:$0xff]
  %5 = vst [vmem:[%s1] sm:$0xf] %v4

// kernel: tile.30
$region0: #{tile.30}
  %s0 = inlined_call_operand.vmem [shape: f32[4,32], index: 0, kind: input, shape index: {}]
  %s1 = inlined_call_operand.vmem [shape: f32[1,128], index: 1, kind: output, shape index: {}]
  $region1: #{tile.30} parent=0
    #allocation0 [shape = 'u8[4096]{0}', space=vmem, size = 0x1000, scoped, tag = 'scoped mem for output reshape']
    #allocation1 [shape = 'u8[4096]{0}', space=vmem, size = 0x1000, scoped, tag = 'scoped mem for input reshape']
    %s3 = sshllo.u32 0, 4
    %v4 = vld [vmem:[%s0] sm:%s3]
    %5 = vst [vmem:[#allocation1] sm:%s3] %v4
    %v6 = vld [vmem:[#allocation1] sm:$0x1]
    %vm7 = vcmask 261120
    %8 = vst.msk [vmem:[#allocation0] sm:$0x1] %vm7, %v6
    %s9 = scalar_lea.vmem [#allocation1], 3
    %v10 = vld [vmem:[%s9] sm:$0x1]
    %11 = vrot.lane.b32.xlu0 %v10, 96
    %v12 = vpop.permute.xlu0 %11
    %vm13 = vcmask 1048320
    %14 = vst.msk [vmem:[#allocation0] sm:$0x1] %vm13, %v12
    %s15 = scalar_lea.vmem [#allocation1], 2
    %v16 = vld [vmem:[%s15] sm:$0x1]
    %17 = vrot.lane.b32.xlu0 %v16, 64
    %v18 = vpop.permute.xlu0 %17
    %vm19 = vcmask 785920
    %20 = vst.msk [vmem:[#allocation0] sm:$0x1] %vm19, %v18
    %s21 = scalar_lea.vmem [#allocation1], 1
    %v22 = vld [vmem:[%s21] sm:$0x1]
    %23 = vrot.lane.b32.xlu0 %v22, 32
    %v24 = vpop.permute.xlu0 %23
    %vm25 = vcmask 523520
    %26 = vst.msk [vmem:[#allocation0] sm:$0x1] %vm25, %v24
    %s28 = sshllo.u32 0, 1
    %v30 = vld [vmem:[#allocation0] sm:%s28]
    %s31 = sshllo.u32 0, 1
    %32 = vst [vmem:[%s1] sm:%s31] %v30

// kernel: simple_block_forward.1
$region0: #{simple_block_forward.1}
  #allocation0 [shape = 'u32[]', space=smem, size = 0x4, offset = 0x4, fixed_abs, tag = 'smem constant byte address 0x4 - core index']
  #allocation1 [shape = 'u32[144,128]{1,0:T(1,128)}', space=vmem, size = 0x12000, scoped, tag = 'internal scratch']
  %s0 = inlined_call_operand.vmem [shape: f32[64,128], index: 0, kind: input, shape index: {}]
  %s1 = inlined_call_operand.vmem [shape: f32[3,32,64], index: 1, kind: input, shape index: {}]
  %s2 = inlined_call_operand.vmem [shape: f32[3,128,128], index: 2, kind: input, shape index: {}]
  %s3 = inlined_call_operand.vmem [shape: f32[1,128], index: 3, kind: input, shape index: {}]
  %s4 = inlined_call_operand.vmem [shape: f32[3,16,32], index: 4, kind: input, shape index: {}]
  %s5 = inlined_call_operand.vmem [shape: f32[3,128,128], index: 5, kind: input, shape index: {}]
  %s6 = inlined_call_operand.vmem [shape: f32[1,128], index: 6, kind: input, shape index: {}]
  %s7 = inlined_call_operand.vmem [shape: f32[3,8,16], index: 7, kind: input, shape index: {}]
  %s8 = inlined_call_operand.vmem [shape: f32[3,128,128], index: 8, kind: input, shape index: {}]
  %s9 = inlined_call_operand.vmem [shape: f32[1,128], index: 9, kind: input, shape index: {}]
  %s10 = inlined_call_operand.vmem [shape: f32[3,8,8], index: 10, kind: input, shape index: {}]
  %s11 = inlined_call_operand.vmem [shape: f32[3,128,128], index: 11, kind: input, shape index: {}]
  %s12 = inlined_call_operand.vmem [shape: f32[1,128], index: 12, kind: input, shape index: {}]
  %s13 = inlined_call_operand.vmem [shape: f32[8,128], index: 13, kind: output, shape index: {}]
  %s14 = sld [smem:[#allocation0]]
  $region62: #{simple_block_forward.1} parent=0
    _
  %s16 = ssub.s32 1, %s14
  %s17 = scalar_select 0, %s16, %s14
  // Predicated region
  $region2: #{simple_block_forward.1} parent=0 // pred_check
    _
  $region3: #{simple_block_forward.1} parent=0 // pred_check_branch
    %19 = sbr.rel (0) target = $region5
  $region4: #{simple_block_forward.1} parent=0 // pred_region
    _
  $region5: #{simple_block_forward.1} parent=0 // pred_fallthru
    _
  // Predicated region
  $region6: #{simple_block_forward.1} parent=0 // pred_check
    _
  $region7: #{simple_block_forward.1} parent=0 // pred_check_branch
    %21 = sbr.rel (0) target = $region9
  $region8: #{simple_block_forward.1} parent=0 // pred_region
    _
  $region9: #{simple_block_forward.1} parent=0 // pred_fallthru
    _
  // Predicated region
  $region10: #{simple_block_forward.1} parent=0 // pred_check
    _
  $region11: #{simple_block_forward.1} parent=0 // pred_check_branch
    %23 = sbr.rel (0) target = $region13
  $region12: #{simple_block_forward.1} parent=0 // pred_region
    _
  $region13: #{simple_block_forward.1} parent=0 // pred_fallthru
    _
  // Predicated region
  $region14: #{simple_block_forward.1} parent=0 // pred_check
    _
  $region15: #{simple_block_forward.1} parent=0 // pred_check_branch
    %25 = sbr.rel (0) target = $region17
  $region16: #{simple_block_forward.1} parent=0 // pred_region
    _
  $region17: #{simple_block_forward.1} parent=0 // pred_fallthru
    _
  // Predicated region
  $region18: #{simple_block_forward.1} parent=0 // pred_check
    _
  $region19: #{simple_block_forward.1} parent=0 // pred_check_branch
    %27 = sbr.rel (0) target = $region21
  $region20: #{simple_block_forward.1} parent=0 // pred_region
    _
  $region21: #{simple_block_forward.1} parent=0 // pred_fallthru
    _
  // Predicated region
  $region22: #{simple_block_forward.1} parent=0 // pred_check
    _
  $region23: #{simple_block_forward.1} parent=0 // pred_check_branch
    %29 = sbr.rel (0) target = $region25
  $region24: #{simple_block_forward.1} parent=0 // pred_region
    _
  $region25: #{simple_block_forward.1} parent=0 // pred_fallthru
    _
  // Predicated region
  $region26: #{simple_block_forward.1} parent=0 // pred_check
    _
  $region27: #{simple_block_forward.1} parent=0 // pred_check_branch
    %31 = sbr.rel (0) target = $region29
  $region28: #{simple_block_forward.1} parent=0 // pred_region
    _
  $region29: #{simple_block_forward.1} parent=0 // pred_fallthru
    _
  // Predicated region
  $region30: #{simple_block_forward.1} parent=0 // pred_check
    _
  $region31: #{simple_block_forward.1} parent=0 // pred_check_branch
    %33 = sbr.rel (0) target = $region33
  $region32: #{simple_block_forward.1} parent=0 // pred_region
    _
  $region33: #{simple_block_forward.1} parent=0 // pred_fallthru
    _
  // Predicated region
  $region34: #{simple_block_forward.1} parent=0 // pred_check
    _
  $region35: #{simple_block_forward.1} parent=0 // pred_check_branch
    %35 = sbr.rel (0) target = $region37
  $region36: #{simple_block_forward.1} parent=0 // pred_region
    _
  $region37: #{simple_block_forward.1} parent=0 // pred_fallthru
    _
  // Predicated region
  $region38: #{simple_block_forward.1} parent=0 // pred_check
    _
  $region39: #{simple_block_forward.1} parent=0 // pred_check_branch
    %37 = sbr.rel (0) target = $region41
  $region40: #{simple_block_forward.1} parent=0 // pred_region
    _
  $region41: #{simple_block_forward.1} parent=0 // pred_fallthru
    _
  // Predicated region
  $region42: #{simple_block_forward.1} parent=0 // pred_check
    _
  $region43: #{simple_block_forward.1} parent=0 // pred_check_branch
    %39 = sbr.rel (0) target = $region45
  $region44: #{simple_block_forward.1} parent=0 // pred_region
    _
  $region45: #{simple_block_forward.1} parent=0 // pred_fallthru
    _
  // Predicated region
  $region46: #{simple_block_forward.1} parent=0 // pred_check
    _
  $region47: #{simple_block_forward.1} parent=0 // pred_check_branch
    %41 = sbr.rel (0) target = $region49
  $region48: #{simple_block_forward.1} parent=0 // pred_region
    _
  $region49: #{simple_block_forward.1} parent=0 // pred_fallthru
    _
  // Predicated region
  $region50: #{simple_block_forward.1} parent=0 // pred_check
    _
  $region51: #{simple_block_forward.1} parent=0 // pred_check_branch
    %43 = sbr.rel (0) target = $region53
  $region52: #{simple_block_forward.1} parent=0 // pred_region
    _
  $region53: #{simple_block_forward.1} parent=0 // pred_fallthru
    _
  %v44 = vld [vmem:[%s0] sm:$0xff]
  %v45 = vld [vmem:[%s0 + $0x8] sm:$0xff]
  %v46 = vld [vmem:[%s0 + $0x10] sm:$0xff]
  %v47 = vld [vmem:[%s0 + $0x18] sm:$0xff]
  %v48 = vld [vmem:[%s0 + $0x20] sm:$0xff]
  %v49 = vld [vmem:[%s0 + $0x28] sm:$0xff]
  %v50 = vld [vmem:[%s0 + $0x30] sm:$0xff]
  %v51 = vld [vmem:[%s0 + $0x38] sm:$0xff]
  %v52 = vld [vmem:[%s1] sm:$0xff]
  %v53 = vld [vmem:[%s1 + $0x8] sm:$0xff]
  %v54 = vld [vmem:[%s1 + $0x10] sm:$0xff]
  %v55 = vld [vmem:[%s1 + $0x18] sm:$0xff]
  %vm56 = vcmask 523264
  %v58 = vsel %vm56, %v52, 0
  %v61 = vsel %vm56, %v53, 0
  %v64 = vsel %vm56, %v54, 0
  %v67 = vsel %vm56, %v55, 0
  %69 = vmatprep.subr.mxu0 0.0
  %70 = vmatpush1.msra.mxu0 %v44
  %71 = vmatprep.subr.mxu0 0.0
  %72 = vmatpush1.msra.mxu0 %v45
  %73 = vmatprep.subr.mxu0 0.0
  %74 = vmatpush1.msra.mxu0 %v46
  %75 = vmatprep.subr.mxu0 0.0
  %76 = vmatpush1.msra.mxu0 %v47
  %77 = vmatprep.subr.mxu0 0.0
  %78 = vmatpush1.msra.mxu0 %v48
  %79 = vmatprep.subr.mxu0 0.0
  %80 = vmatpush1.msra.mxu0 %v49
  %81 = vmatprep.subr.mxu0 0.0
  %82 = vmatpush1.msra.mxu0 %v50
  %83 = vmatprep.subr.mxu0 0.0
  %84 = vmatpush1.msra.mxu0 %v51
  %85 = vmatprep.subr.mxu0 0.0
  %86 = vmatpush1.msra.mxu0 0.0
  %87 = vmatprep.subr.mxu0 0.0
  %88 = vmatpush1.msra.mxu0 0.0
  %89 = vmatprep.subr.mxu0 0.0
  %90 = vmatpush1.msra.mxu0 0.0
  %91 = vmatprep.subr.mxu0 0.0
  %92 = vmatpush1.msra.mxu0 0.0
  %93 = vmatprep.subr.mxu0 0.0
  %94 = vmatpush1.msra.mxu0 0.0
  %95 = vmatprep.subr.mxu0 0.0
  %96 = vmatpush1.msra.mxu0 0.0
  %97 = vmatprep.subr.mxu0 0.0
  %98 = vmatpush1.msra.mxu0 0.0
  %99 = vmatprep.subr.mxu0 0.0
  %100 = vmatpush1.msra.mxu0 0.0
  %101 = vmatprep.subr.mxu0 0.0
  %102 = vmatpush1.msra.mxu0 0.0
  %103 = vmatprep.subr.mxu0 0.0
  %104 = vmatpush1.msra.mxu0 0.0
  %105 = vmatprep.subr.mxu0 0.0
  %106 = vmatpush1.msra.mxu0 0.0
  %107 = vmatprep.subr.mxu0 0.0
  %108 = vmatpush1.msra.mxu0 0.0
  %109 = vmatprep.subr.mxu0 0.0
  %110 = vmatpush1.msra.mxu0 0.0
  %111 = vmatprep.subr.mxu0 0.0
  %112 = vmatpush1.msra.mxu0 0.0
  %113 = vmatprep.subr.mxu0 0.0
  %114 = vmatpush1.msra.mxu0 0.0
  %115 = vmatprep.subr.mxu0 0.0
  %116 = vmatpush1.msra.mxu0 0.0
  %117 = vmatprep.subr.mxu0 0.0
  %118 = vmatpush1.msra.mxu0 0.0
  %119 = vmatprep.subr.mxu0 0.0
  %120 = vmatpush1.msra.mxu0 0.0
  %121 = vmatprep.subr.mxu0 0.0
  %122 = vmatpush1.msra.mxu0 0.0
  %123 = vmatprep.subr.mxu0 0.0
  %124 = vmatpush1.msra.mxu0 0.0
  %125 = vmatprep.subr.mxu0 0.0
  %126 = vmatpush1.msra.mxu0 0.0
  %127 = vmatprep.subr.mxu0 0.0
  %128 = vmatpush1.msra.mxu0 0.0
  %129 = vmatprep.subr.mxu0 0.0
  %130 = vmatpush1.msra.mxu0 0.0
  %131 = vmatprep.subr.mxu0 0.0
  %132 = vmatpush1.msra.mxu0 0.0
  %133 = vmatprep.mubr.f32.mxu0 0.0
  %134 = vmatmul.mubr.f32.gmra.mrb[0].mxu0 %v58
  %v135 = vpop.f32.mrb[0].mxu0
  %v136 = vadd.f32 0.0, %v135
  %v137 = vpop.f32.mrb[0].mxu0
  %138 = vmatprep.mubr.f32.mxu0 0.0
  %139 = vmatmul.mubr.f32.gmra.mrb[0].mxu0 %v61
  %v140 = vpop.f32.mrb[0].mxu0
  %v141 = vadd.f32 0.0, %v140
  %v142 = vpop.f32.mrb[0].mxu0
  %143 = vmatprep.mubr.f32.mxu0 0.0
  %144 = vmatmul.mubr.f32.gmra.mrb[0].mxu0 %v64
  %v145 = vpop.f32.mrb[0].mxu0
  %v146 = vadd.f32 0.0, %v145
  %v147 = vpop.f32.mrb[0].mxu0
  %148 = vmatprep.mubr.f32.mxu0 0.0
  %149 = vmatmul.mubr.f32.gmra.mrb[0].mxu0 %v67
  %v150 = vpop.f32.mrb[0].mxu0
  %v151 = vadd.f32 0.0, %v150
  %v152 = vpop.f32.mrb[0].mxu0
  %153 = vdwg.mxu0
  %v154 = vld [vmem:[%s2] sm:$0xff]
  %v155 = vld [vmem:[%s2 + $0x8] sm:$0xff]
  %v156 = vld [vmem:[%s2 + $0x10] sm:$0xff]
  %v157 = vld [vmem:[%s2 + $0x18] sm:$0xff]
  %v158 = vld [vmem:[%s2 + $0x20] sm:$0xff]
  %v159 = vld [vmem:[%s2 + $0x28] sm:$0xff]
  %v160 = vld [vmem:[%s2 + $0x30] sm:$0xff]
  %v161 = vld [vmem:[%s2 + $0x38] sm:$0xff]
  %v162 = vld [vmem:[%s2 + $0x40] sm:$0xff]
  %v163 = vld [vmem:[%s2 + $0x48] sm:$0xff]
  %v164 = vld [vmem:[%s2 + $0x50] sm:$0xff]
  %v165 = vld [vmem:[%s2 + $0x58] sm:$0xff]
  %v166 = vld [vmem:[%s2 + $0x60] sm:$0xff]
  %v167 = vld [vmem:[%s2 + $0x68] sm:$0xff]
  %v168 = vld [vmem:[%s2 + $0x70] sm:$0xff]
  %v169 = vld [vmem:[%s2 + $0x78] sm:$0xff]
  %s170 = scalar_lea.vmem %s1, 32
  %v171 = vld [vmem:[%s170] sm:$0xff]
  %v172 = vld [vmem:[%s170 + $0x8] sm:$0xff]
  %v173 = vld [vmem:[%s170 + $0x10] sm:$0xff]
  %v174 = vld [vmem:[%s170 + $0x18] sm:$0xff]
  %v176 = vsel %vm56, %v171, 0
  %v179 = vsel %vm56, %v172, 0
  %v182 = vsel %vm56, %v173, 0
  %v185 = vsel %vm56, %v174, 0
  %187 = vmatprep.subr.mxu0 0.0
  %188 = vmatpush1.msra.mxu0 %v44
  %189 = vmatprep.subr.mxu0 0.0
  %190 = vmatpush1.msra.mxu0 %v45
  %191 = vmatprep.subr.mxu0 0.0
  %192 = vmatpush1.msra.mxu0 %v46
  %193 = vmatprep.subr.mxu0 0.0
  %194 = vmatpush1.msra.mxu0 %v47
  %195 = vmatprep.subr.mxu0 0.0
  %196 = vmatpush1.msra.mxu0 %v48
  %197 = vmatprep.subr.mxu0 0.0
  %198 = vmatpush1.msra.mxu0 %v49
  %199 = vmatprep.subr.mxu0 0.0
  %200 = vmatpush1.msra.mxu0 %v50
  %201 = vmatprep.subr.mxu0 0.0
  %202 = vmatpush1.msra.mxu0 %v51
  %203 = vmatprep.subr.mxu0 0.0
  %204 = vmatpush1.msra.mxu0 0.0
  %205 = vmatprep.subr.mxu0 0.0
  %206 = vmatpush1.msra.mxu0 0.0
  %207 = vmatprep.subr.mxu0 0.0
  %208 = vmatpush1.msra.mxu0 0.0
  %209 = vmatprep.subr.mxu0 0.0
  %210 = vmatpush1.msra.mxu0 0.0
  %211 = vmatprep.subr.mxu0 0.0
  %212 = vmatpush1.msra.mxu0 0.0
  %213 = vmatprep.subr.mxu0 0.0
  %214 = vmatpush1.msra.mxu0 0.0
  %215 = vmatprep.subr.mxu0 0.0
  %216 = vmatpush1.msra.mxu0 0.0
  %217 = vmatprep.subr.mxu0 0.0
  %218 = vmatpush1.msra.mxu0 0.0
  %219 = vmatprep.subr.mxu0 0.0
  %220 = vmatpush1.msra.mxu0 0.0
  %221 = vmatprep.subr.mxu0 0.0
  %222 = vmatpush1.msra.mxu0 0.0
  %223 = vmatprep.subr.mxu0 0.0
  %224 = vmatpush1.msra.mxu0 0.0
  %225 = vmatprep.subr.mxu0 0.0
  %226 = vmatpush1.msra.mxu0 0.0
  %227 = vmatprep.subr.mxu0 0.0
  %228 = vmatpush1.msra.mxu0 0.0
  %229 = vmatprep.subr.mxu0 0.0
  %230 = vmatpush1.msra.mxu0 0.0
  %231 = vmatprep.subr.mxu0 0.0
  %232 = vmatpush1.msra.mxu0 0.0
  %233 = vmatprep.subr.mxu0 0.0
  %234 = vmatpush1.msra.mxu0 0.0
  %235 = vmatprep.subr.mxu0 0.0
  %236 = vmatpush1.msra.mxu0 0.0
  %237 = vmatprep.subr.mxu0 0.0
  %238 = vmatpush1.msra.mxu0 0.0
  %239 = vmatprep.subr.mxu0 0.0
  %240 = vmatpush1.msra.mxu0 0.0
  %241 = vmatprep.subr.mxu0 0.0
  %242 = vmatpush1.msra.mxu0 0.0
  %243 = vmatprep.subr.mxu0 0.0
  %244 = vmatpush1.msra.mxu0 0.0
  %245 = vmatprep.subr.mxu0 0.0
  %246 = vmatpush1.msra.mxu0 0.0
  %247 = vmatprep.subr.mxu0 0.0
  %248 = vmatpush1.msra.mxu0 0.0
  %249 = vmatprep.subr.mxu0 0.0
  %250 = vmatpush1.msra.mxu0 0.0
  %251 = vmatprep.mubr.f32.mxu0 0.0
  %252 = vmatmul.mubr.f32.gmra.mrb[0].mxu0 %v176
  %v253 = vpop.f32.mrb[0].mxu0
  %v254 = vadd.f32 0.0, %v253
  %v255 = vpop.f32.mrb[0].mxu0
  %256 = vmatprep.mubr.f32.mxu0 0.0
  %257 = vmatmul.mubr.f32.gmra.mrb[0].mxu0 %v179
  %v258 = vpop.f32.mrb[0].mxu0
  %v259 = vadd.f32 0.0, %v258
  %v260 = vpop.f32.mrb[0].mxu0
  %261 = vmatprep.mubr.f32.mxu0 0.0
  %262 = vmatmul.mubr.f32.gmra.mrb[0].mxu0 %v182
  %v263 = vpop.f32.mrb[0].mxu0
  %v264 = vadd.f32 0.0, %v263
  %v265 = vpop.f32.mrb[0].mxu0
  %266 = vmatprep.mubr.f32.mxu0 0.0
  %267 = vmatmul.mubr.f32.gmra.mrb[0].mxu0 %v185
  %v268 = vpop.f32.mrb[0].mxu0
  %v269 = vadd.f32 0.0, %v268
  %v270 = vpop.f32.mrb[0].mxu0
  %271 = vdwg.mxu0
  %s272 = scalar_lea.vmem %s2, 128
  %v273 = vld [vmem:[%s272] sm:$0xff]
  %v274 = vld [vmem:[%s272 + $0x8] sm:$0xff]
  %v275 = vld [vmem:[%s272 + $0x10] sm:$0xff]
  %v276 = vld [vmem:[%s272 + $0x18] sm:$0xff]
  %v277 = vld [vmem:[%s272 + $0x20] sm:$0xff]
  %v278 = vld [vmem:[%s272 + $0x28] sm:$0xff]
  %v279 = vld [vmem:[%s272 + $0x30] sm:$0xff]
  %v280 = vld [vmem:[%s272 + $0x38] sm:$0xff]
  %v281 = vld [vmem:[%s272 + $0x40] sm:$0xff]
  %v282 = vld [vmem:[%s272 + $0x48] sm:$0xff]
  %v283 = vld [vmem:[%s272 + $0x50] sm:$0xff]
  %v284 = vld [vmem:[%s272 + $0x58] sm:$0xff]
  %v285 = vld [vmem:[%s272 + $0x60] sm:$0xff]
  %v286 = vld [vmem:[%s272 + $0x68] sm:$0xff]
  %v287 = vld [vmem:[%s272 + $0x70] sm:$0xff]
  %v288 = vld [vmem:[%s272 + $0x78] sm:$0xff]
  %289 = vmatprep.subr.mxu0 0.0
  %290 = vmatpush1.msra.mxu0 %v273
  %291 = vmatprep.subr.mxu0 0.0
  %292 = vmatpush1.msra.mxu0 %v274
  %293 = vmatprep.subr.mxu0 0.0
  %294 = vmatpush1.msra.mxu0 %v275
  %295 = vmatprep.subr.mxu0 0.0
  %296 = vmatpush1.msra.mxu0 %v276
  %297 = vmatprep.subr.mxu0 0.0
  %298 = vmatpush1.msra.mxu0 %v277
  %299 = vmatprep.subr.mxu0 0.0
  %300 = vmatpush1.msra.mxu0 %v278
  %301 = vmatprep.subr.mxu0 0.0
  %302 = vmatpush1.msra.mxu0 %v279
  %303 = vmatprep.subr.mxu0 0.0
  %304 = vmatpush1.msra.mxu0 %v280
  %305 = vmatprep.subr.mxu0 0.0
  %306 = vmatpush1.msra.mxu0 %v281
  %307 = vmatprep.subr.mxu0 0.0
  %308 = vmatpush1.msra.mxu0 %v282
  %309 = vmatprep.subr.mxu0 0.0
  %310 = vmatpush1.msra.mxu0 %v283
  %311 = vmatprep.subr.mxu0 0.0
  %312 = vmatpush1.msra.mxu0 %v284
  %313 = vmatprep.subr.mxu0 0.0
  %314 = vmatpush1.msra.mxu0 %v285
  %315 = vmatprep.subr.mxu0 0.0
  %316 = vmatpush1.msra.mxu0 %v286
  %317 = vmatprep.subr.mxu0 0.0
  %318 = vmatpush1.msra.mxu0 %v287
  %319 = vmatprep.subr.mxu0 0.0
  %320 = vmatpush1.msra.mxu0 %v288
  %321 = vmatprep.subr.mxu0 0.0
  %322 = vmatpush1.msra.mxu0 0.0
  %323 = vmatprep.subr.mxu0 0.0
  %324 = vmatpush1.msra.mxu0 0.0
  %325 = vmatprep.subr.mxu0 0.0
  %326 = vmatpush1.msra.mxu0 0.0
  %327 = vmatprep.subr.mxu0 0.0
  %328 = vmatpush1.msra.mxu0 0.0
  %329 = vmatprep.subr.mxu0 0.0
  %330 = vmatpush1.msra.mxu0 0.0
  %331 = vmatprep.subr.mxu0 0.0
  %332 = vmatpush1.msra.mxu0 0.0
  %333 = vmatprep.subr.mxu0 0.0
  %334 = vmatpush1.msra.mxu0 0.0
  %335 = vmatprep.subr.mxu0 0.0
  %336 = vmatpush1.msra.mxu0 0.0
  %337 = vmatprep.subr.mxu0 0.0
  %338 = vmatpush1.msra.mxu0 0.0
  %339 = vmatprep.subr.mxu0 0.0
  %340 = vmatpush1.msra.mxu0 0.0
  %341 = vmatprep.subr.mxu0 0.0
  %342 = vmatpush1.msra.mxu0 0.0
  %343 = vmatprep.subr.mxu0 0.0
  %344 = vmatpush1.msra.mxu0 0.0
  %345 = vmatprep.subr.mxu0 0.0
  %346 = vmatpush1.msra.mxu0 0.0
  %347 = vmatprep.subr.mxu0 0.0
  %348 = vmatpush1.msra.mxu0 0.0
  %349 = vmatprep.subr.mxu0 0.0
  %350 = vmatpush1.msra.mxu0 0.0
  %351 = vmatprep.subr.mxu0 0.0
  %352 = vmatpush1.msra.mxu0 0.0
  %353 = vmatprep.mubr.f32.mxu0 0.0
  %354 = vmatmul.mubr.f32.gmra.mrb[0].mxu0 %v254
  %v355 = vpop.f32.mrb[0].mxu0
  %v356 = vadd.f32 0.0, %v355
  %v357 = vpop.f32.mrb[0].mxu0
  %358 = vmatprep.mubr.f32.mxu0 0.0
  %359 = vmatmul.mubr.f32.gmra.mrb[0].mxu0 %v259
  %v360 = vpop.f32.mrb[0].mxu0
  %v361 = vadd.f32 0.0, %v360
  %v362 = vpop.f32.mrb[0].mxu0
  %363 = vmatprep.mubr.f32.mxu0 0.0
  %364 = vmatmul.mubr.f32.gmra.mrb[0].mxu0 %v264
  %v365 = vpop.f32.mrb[0].mxu0
  %v366 = vadd.f32 0.0, %v365
  %v367 = vpop.f32.mrb[0].mxu0
  %368 = vmatprep.mubr.f32.mxu0 0.0
  %369 = vmatmul.mubr.f32.gmra.mrb[0].mxu0 %v269
  %v370 = vpop.f32.mrb[0].mxu0
  %v371 = vadd.f32 0.0, %v370
  %v372 = vpop.f32.mrb[0].mxu0
  %373 = vdwg.mxu0
  %374 = vmatprep.subr.mxu0 0.0
  %375 = vmatpush1.msra.mxu0 %v154
  %376 = vmatprep.subr.mxu0 0.0
  %377 = vmatpush1.msra.mxu0 %v155
  %378 = vmatprep.subr.mxu0 0.0
  %379 = vmatpush1.msra.mxu0 %v156
  %380 = vmatprep.subr.mxu0 0.0
  %381 = vmatpush1.msra.mxu0 %v157
  %382 = vmatprep.subr.mxu0 0.0
  %383 = vmatpush1.msra.mxu0 %v158
  %384 = vmatprep.subr.mxu0 0.0
  %385 = vmatpush1.msra.mxu0 %v159
  %386 = vmatprep.subr.mxu0 0.0
  %387 = vmatpush1.msra.mxu0 %v160
  %388 = vmatprep.subr.mxu0 0.0
  %389 = vmatpush1.msra.mxu0 %v161
  %390 = vmatprep.subr.mxu0 0.0
  %391 = vmatpush1.msra.mxu0 %v162
  %392 = vmatprep.subr.mxu0 0.0
  %393 = vmatpush1.msra.mxu0 %v163
  %394 = vmatprep.subr.mxu0 0.0
  %395 = vmatpush1.msra.mxu0 %v164
  %396 = vmatprep.subr.mxu0 0.0
  %397 = vmatpush1.msra.mxu0 %v165
  %398 = vmatprep.subr.mxu0 0.0
  %399 = vmatpush1.msra.mxu0 %v166
  %400 = vmatprep.subr.mxu0 0.0
  %401 = vmatpush1.msra.mxu0 %v167
  %402 = vmatprep.subr.mxu0 0.0
  %403 = vmatpush1.msra.mxu0 %v168
  %404 = vmatprep.subr.mxu0 0.0
  %405 = vmatpush1.msra.mxu0 %v169
  %406 = vmatprep.subr.mxu0 0.0
  %407 = vmatpush1.msra.mxu0 0.0
  %408 = vmatprep.subr.mxu0 0.0
  %409 = vmatpush1.msra.mxu0 0.0
  %410 = vmatprep.subr.mxu0 0.0
  %411 = vmatpush1.msra.mxu0 0.0
  %412 = vmatprep.subr.mxu0 0.0
  %413 = vmatpush1.msra.mxu0 0.0
  %414 = vmatprep.subr.mxu0 0.0
  %415 = vmatpush1.msra.mxu0 0.0
  %416 = vmatprep.subr.mxu0 0.0
  %417 = vmatpush1.msra.mxu0 0.0
  %418 = vmatprep.subr.mxu0 0.0
  %419 = vmatpush1.msra.mxu0 0.0
  %420 = vmatprep.subr.mxu0 0.0
  %421 = vmatpush1.msra.mxu0 0.0
  %422 = vmatprep.subr.mxu0 0.0
  %423 = vmatpush1.msra.mxu0 0.0
  %424 = vmatprep.subr.mxu0 0.0
  %425 = vmatpush1.msra.mxu0 0.0
  %426 = vmatprep.subr.mxu0 0.0
  %427 = vmatpush1.msra.mxu0 0.0
  %428 = vmatprep.subr.mxu0 0.0
  %429 = vmatpush1.msra.mxu0 0.0
  %430 = vmatprep.subr.mxu0 0.0
  %431 = vmatpush1.msra.mxu0 0.0
  %432 = vmatprep.subr.mxu0 0.0
  %433 = vmatpush1.msra.mxu0 0.0
  %434 = vmatprep.subr.mxu0 0.0
  %435 = vmatpush1.msra.mxu0 0.0
  %436 = vmatprep.subr.mxu0 0.0
  %437 = vmatpush1.msra.mxu0 0.0
  %438 = vmatprep.mubr.f32.mxu0 0.0
  %439 = vmatmul.mubr.f32.gmra.mrb[0].mxu0 %v136
  %v440 = vpop.f32.mrb[0].mxu0
  %v441 = vadd.f32 %v356, %v440
  %v442 = vpop.f32.mrb[0].mxu0
  %443 = vmatprep.mubr.f32.mxu0 0.0
  %444 = vmatmul.mubr.f32.gmra.mrb[0].mxu0 %v141
  %v445 = vpop.f32.mrb[0].mxu0
  %v446 = vadd.f32 %v361, %v445
  %v447 = vpop.f32.mrb[0].mxu0
  %448 = vmatprep.mubr.f32.mxu0 0.0
  %449 = vmatmul.mubr.f32.gmra.mrb[0].mxu0 %v146
  %v450 = vpop.f32.mrb[0].mxu0
  %v451 = vadd.f32 %v366, %v450
  %v452 = vpop.f32.mrb[0].mxu0
  %453 = vmatprep.mubr.f32.mxu0 0.0
  %454 = vmatmul.mubr.f32.gmra.mrb[0].mxu0 %v151
  %v455 = vpop.f32.mrb[0].mxu0
  %v456 = vadd.f32 %v371, %v455
  %v457 = vpop.f32.mrb[0].mxu0
  %458 = vdwg.mxu0
  %s459 = scalar_lea.vmem %s1, 64
  %v460 = vld [vmem:[%s459] sm:$0xff]
  %v461 = vld [vmem:[%s459 + $0x8] sm:$0xff]
  %v462 = vld [vmem:[%s459 + $0x10] sm:$0xff]
  %v463 = vld [vmem:[%s459 + $0x18] sm:$0xff]
  %v465 = vsel %vm56, %v460, 0
  %v468 = vsel %vm56, %v461, 0
  %v471 = vsel %vm56, %v462, 0
  %v474 = vsel %vm56, %v463, 0
  %476 = vmatprep.subr.mxu0 0.0
  %477 = vmatpush1.msra.mxu0 %v44
  %478 = vmatprep.subr.mxu0 0.0
  %479 = vmatpush1.msra.mxu0 %v45
  %480 = vmatprep.subr.mxu0 0.0
  %481 = vmatpush1.msra.mxu0 %v46
  %482 = vmatprep.subr.mxu0 0.0
  %483 = vmatpush1.msra.mxu0 %v47
  %484 = vmatprep.subr.mxu0 0.0
  %485 = vmatpush1.msra.mxu0 %v48
  %486 = vmatprep.subr.mxu0 0.0
  %487 = vmatpush1.msra.mxu0 %v49
  %488 = vmatprep.subr.mxu0 0.0
  %489 = vmatpush1.msra.mxu0 %v50
  %490 = vmatprep.subr.mxu0 0.0
  %491 = vmatpush1.msra.mxu0 %v51
  %492 = vmatprep.subr.mxu0 0.0
  %493 = vmatpush1.msra.mxu0 0.0
  %494 = vmatprep.subr.mxu0 0.0
  %495 = vmatpush1.msra.mxu0 0.0
  %496 = vmatprep.subr.mxu0 0.0
  %497 = vmatpush1.msra.mxu0 0.0
  %498 = vmatprep.subr.mxu0 0.0
  %499 = vmatpush1.msra.mxu0 0.0
  %500 = vmatprep.subr.mxu0 0.0
  %501 = vmatpush1.msra.mxu0 0.0
  %502 = vmatprep.subr.mxu0 0.0
  %503 = vmatpush1.msra.mxu0 0.0
  %504 = vmatprep.subr.mxu0 0.0
  %505 = vmatpush1.msra.mxu0 0.0
  %506 = vmatprep.subr.mxu0 0.0
  %507 = vmatpush1.msra.mxu0 0.0
  %508 = vmatprep.subr.mxu0 0.0
  %509 = vmatpush1.msra.mxu0 0.0
  %510 = vmatprep.subr.mxu0 0.0
  %511 = vmatpush1.msra.mxu0 0.0
  %512 = vmatprep.subr.mxu0 0.0
  %513 = vmatpush1.msra.mxu0 0.0
  %514 = vmatprep.subr.mxu0 0.0
  %515 = vmatpush1.msra.mxu0 0.0
  %516 = vmatprep.subr.mxu0 0.0
  %517 = vmatpush1.msra.mxu0 0.0
  %518 = vmatprep.subr.mxu0 0.0
  %519 = vmatpush1.msra.mxu0 0.0
  %520 = vmatprep.subr.mxu0 0.0
  %521 = vmatpush1.msra.mxu0 0.0
  %522 = vmatprep.subr.mxu0 0.0
  %523 = vmatpush1.msra.mxu0 0.0
  %524 = vmatprep.subr.mxu0 0.0
  %525 = vmatpush1.msra.mxu0 0.0
  %526 = vmatprep.subr.mxu0 0.0
  %527 = vmatpush1.msra.mxu0 0.0
  %528 = vmatprep.subr.mxu0 0.0
  %529 = vmatpush1.msra.mxu0 0.0
  %530 = vmatprep.subr.mxu0 0.0
  %531 = vmatpush1.msra.mxu0 0.0
  %532 = vmatprep.subr.mxu0 0.0
  %533 = vmatpush1.msra.mxu0 0.0
  %534 = vmatprep.subr.mxu0 0.0
  %535 = vmatpush1.msra.mxu0 0.0
  %536 = vmatprep.subr.mxu0 0.0
  %537 = vmatpush1.msra.mxu0 0.0
  %538 = vmatprep.subr.mxu0 0.0
  %539 = vmatpush1.msra.mxu0 0.0
  %540 = vmatprep.mubr.f32.mxu0 0.0
  %541 = vmatmul.mubr.f32.gmra.mrb[0].mxu0 %v465
  %v542 = vpop.f32.mrb[0].mxu0
  %v543 = vadd.f32 0.0, %v542
  %v544 = vpop.f32.mrb[0].mxu0
  %545 = vmatprep.mubr.f32.mxu0 0.0
  %546 = vmatmul.mubr.f32.gmra.mrb[0].mxu0 %v468
  %v547 = vpop.f32.mrb[0].mxu0
  %v548 = vadd.f32 0.0, %v547
  %v549 = vpop.f32.mrb[0].mxu0
  %550 = vmatprep.mubr.f32.mxu0 0.0
  %551 = vmatmul.mubr.f32.gmra.mrb[0].mxu0 %v471
  %v552 = vpop.f32.mrb[0].mxu0
  %v553 = vadd.f32 0.0, %v552
  %v554 = vpop.f32.mrb[0].mxu0
  %555 = vmatprep.mubr.f32.mxu0 0.0
  %556 = vmatmul.mubr.f32.gmra.mrb[0].mxu0 %v474
  %v557 = vpop.f32.mrb[0].mxu0
  %v558 = vadd.f32 0.0, %v557
  %v559 = vpop.f32.mrb[0].mxu0
  %560 = vdwg.mxu0
  %s561 = scalar_lea.vmem %s2, 256
  %v562 = vld [vmem:[%s561] sm:$0xff]
  %v563 = vld [vmem:[%s561 + $0x8] sm:$0xff]
  %v564 = vld [vmem:[%s561 + $0x10] sm:$0xff]
  %v565 = vld [vmem:[%s561 + $0x18] sm:$0xff]
  %v566 = vld [vmem:[%s561 + $0x20] sm:$0xff]
  %v567 = vld [vmem:[%s561 + $0x28] sm:$0xff]
  %v568 = vld [vmem:[%s561 + $0x30] sm:$0xff]
  %v569 = vld [vmem:[%s561 + $0x38] sm:$0xff]
  %v570 = vld [vmem:[%s561 + $0x40] sm:$0xff]
  %v571 = vld [vmem:[%s561 + $0x48] sm:$0xff]
  %v572 = vld [vmem:[%s561 + $0x50] sm:$0xff]
  %v573 = vld [vmem:[%s561 + $0x58] sm:$0xff]
  %v574 = vld [vmem:[%s561 + $0x60] sm:$0xff]
  %v575 = vld [vmem:[%s561 + $0x68] sm:$0xff]
  %v576 = vld [vmem:[%s561 + $0x70] sm:$0xff]
  %v577 = vld [vmem:[%s561 + $0x78] sm:$0xff]
  %578 = vmatprep.subr.mxu0 0.0
  %579 = vmatpush1.msra.mxu0 %v562
  %580 = vmatprep.subr.mxu0 0.0
  %581 = vmatpush1.msra.mxu0 %v563
  %582 = vmatprep.subr.mxu0 0.0
  %583 = vmatpush1.msra.mxu0 %v564
  %584 = vmatprep.subr.mxu0 0.0
  %585 = vmatpush1.msra.mxu0 %v565
  %586 = vmatprep.subr.mxu0 0.0
  %587 = vmatpush1.msra.mxu0 %v566
  %588 = vmatprep.subr.mxu0 0.0
  %589 = vmatpush1.msra.mxu0 %v567
  %590 = vmatprep.subr.mxu0 0.0
  %591 = vmatpush1.msra.mxu0 %v568
  %592 = vmatprep.subr.mxu0 0.0
  %593 = vmatpush1.msra.mxu0 %v569
  %594 = vmatprep.subr.mxu0 0.0
  %595 = vmatpush1.msra.mxu0 %v570
  %596 = vmatprep.subr.mxu0 0.0
  %597 = vmatpush1.msra.mxu0 %v571
  %598 = vmatprep.subr.mxu0 0.0
  %599 = vmatpush1.msra.mxu0 %v572
  %600 = vmatprep.subr.mxu0 0.0
  %601 = vmatpush1.msra.mxu0 %v573
  %602 = vmatprep.subr.mxu0 0.0
  %603 = vmatpush1.msra.mxu0 %v574
  %604 = vmatprep.subr.mxu0 0.0
  %605 = vmatpush1.msra.mxu0 %v575
  %606 = vmatprep.subr.mxu0 0.0
  %607 = vmatpush1.msra.mxu0 %v576
  %608 = vmatprep.subr.mxu0 0.0
  %609 = vmatpush1.msra.mxu0 %v577
  %610 = vmatprep.subr.mxu0 0.0
  %611 = vmatpush1.msra.mxu0 0.0
  %612 = vmatprep.subr.mxu0 0.0
  %613 = vmatpush1.msra.mxu0 0.0
  %614 = vmatprep.subr.mxu0 0.0
  %615 = vmatpush1.msra.mxu0 0.0
  %616 = vmatprep.subr.mxu0 0.0
  %617 = vmatpush1.msra.mxu0 0.0
  %618 = vmatprep.subr.mxu0 0.0
  %619 = vmatpush1.msra.mxu0 0.0
  %620 = vmatprep.subr.mxu0 0.0
  %621 = vmatpush1.msra.mxu0 0.0
  %622 = vmatprep.subr.mxu0 0.0
  %623 = vmatpush1.msra.mxu0 0.0
  %624 = vmatprep.subr.mxu0 0.0
  %625 = vmatpush1.msra.mxu0 0.0
  %626 = vmatprep.subr.mxu0 0.0
  %627 = vmatpush1.msra.mxu0 0.0
  %628 = vmatprep.subr.mxu0 0.0
  %629 = vmatpush1.msra.mxu0 0.0
  %630 = vmatprep.subr.mxu0 0.0
  %631 = vmatpush1.msra.mxu0 0.0
  %632 = vmatprep.subr.mxu0 0.0
  %633 = vmatpush1.msra.mxu0 0.0
  %634 = vmatprep.subr.mxu0 0.0
  %635 = vmatpush1.msra.mxu0 0.0
  %636 = vmatprep.subr.mxu0 0.0
  %637 = vmatpush1.msra.mxu0 0.0
  %638 = vmatprep.subr.mxu0 0.0
  %639 = vmatpush1.msra.mxu0 0.0
  %640 = vmatprep.subr.mxu0 0.0
  %641 = vmatpush1.msra.mxu0 0.0
  %642 = vmatprep.mubr.f32.mxu0 0.0
  %643 = vmatmul.mubr.f32.gmra.mrb[0].mxu0 %v543
  %v644 = vpop.f32.mrb[0].mxu0
  %v645 = vadd.f32 0.0, %v644
  %v646 = vpop.f32.mrb[0].mxu0
  %647 = vmatprep.mubr.f32.mxu0 0.0
  %648 = vmatmul.mubr.f32.gmra.mrb[0].mxu0 %v548
  %v649 = vpop.f32.mrb[0].mxu0
  %v650 = vadd.f32 0.0, %v649
  %v651 = vpop.f32.mrb[0].mxu0
  %652 = vmatprep.mubr.f32.mxu0 0.0
  %653 = vmatmul.mubr.f32.gmra.mrb[0].mxu0 %v553
  %v654 = vpop.f32.mrb[0].mxu0
  %v655 = vadd.f32 0.0, %v654
  %v656 = vpop.f32.mrb[0].mxu0
  %657 = vmatprep.mubr.f32.mxu0 0.0
  %658 = vmatmul.mubr.f32.gmra.mrb[0].mxu0 %v558
  %v659 = vpop.f32.mrb[0].mxu0
  %v660 = vadd.f32 0.0, %v659
  %v661 = vpop.f32.mrb[0].mxu0
  %662 = vdwg.mxu0
  %v663 = vadd.f32 %v441, %v645
  %v664 = vadd.f32 %v446, %v650
  %v665 = vadd.f32 %v451, %v655
  %v666 = vadd.f32 %v456, %v660
  %v667 = vld [vmem:[%s3] sm:$0x1]
  %v669 = vlaneseq
  %v670 = vshrl.u32 %v669, 7
  %v671 = vsub.s32 0, %v670
  %v672 = vrot.slane %v667, %v671
  %v674 = vadd.f32 %v663, %v672
  %v675 = vadd.f32 %v664, %v672
  %v676 = vadd.f32 %v665, %v672
  %v677 = vadd.f32 %v666, %v672
  %v678 = vmax.f32 %v674, 0.0
  %v679 = vmax.f32 %v675, 0.0
  %v680 = vmax.f32 %v676, 0.0
  %v681 = vmax.f32 %v677, 0.0
  %v682 = vld [vmem:[%s4] sm:$0xff]
  %v683 = vld [vmem:[%s4 + $0x8] sm:$0xff]
  %vm684 = vcmask 261120
  %v686 = vsel %vm684, %v682, 0
  %v689 = vsel %vm684, %v683, 0
  %691 = vmatprep.subr.mxu0 0.0
  %692 = vmatpush1.msra.mxu0 %v678
  %693 = vmatprep.subr.mxu0 0.0
  %694 = vmatpush1.msra.mxu0 %v679
  %695 = vmatprep.subr.mxu0 0.0
  %696 = vmatpush1.msra.mxu0 %v680
  %697 = vmatprep.subr.mxu0 0.0
  %698 = vmatpush1.msra.mxu0 %v681
  %699 = vmatprep.subr.mxu0 0.0
  %700 = vmatpush1.msra.mxu0 0.0
  %701 = vmatprep.subr.mxu0 0.0
  %702 = vmatpush1.msra.mxu0 0.0
  %703 = vmatprep.subr.mxu0 0.0
  %704 = vmatpush1.msra.mxu0 0.0
  %705 = vmatprep.subr.mxu0 0.0
  %706 = vmatpush1.msra.mxu0 0.0
  %707 = vmatprep.subr.mxu0 0.0
  %708 = vmatpush1.msra.mxu0 0.0
  %709 = vmatprep.subr.mxu0 0.0
  %710 = vmatpush1.msra.mxu0 0.0
  %711 = vmatprep.subr.mxu0 0.0
  %712 = vmatpush1.msra.mxu0 0.0
  %713 = vmatprep.subr.mxu0 0.0
  %714 = vmatpush1.msra.mxu0 0.0
  %715 = vmatprep.subr.mxu0 0.0
  %716 = vmatpush1.msra.mxu0 0.0
  %717 = vmatprep.subr.mxu0 0.0
  %718 = vmatpush1.msra.mxu0 0.0
  %719 = vmatprep.subr.mxu0 0.0
  %720 = vmatpush1.msra.mxu0 0.0
  %721 = vmatprep.subr.mxu0 0.0
  %722 = vmatpush1.msra.mxu0 0.0
  %723 = vmatprep.subr.mxu0 0.0
  %724 = vmatpush1.msra.mxu0 0.0
  %725 = vmatprep.subr.mxu0 0.0
  %726 = vmatpush1.msra.mxu0 0.0
  %727 = vmatprep.subr.mxu0 0.0
  %728 = vmatpush1.msra.mxu0 0.0
  %729 = vmatprep.subr.mxu0 0.0
  %730 = vmatpush1.msra.mxu0 0.0
  %731 = vmatprep.subr.mxu0 0.0
  %732 = vmatpush1.msra.mxu0 0.0
  %733 = vmatprep.subr.mxu0 0.0
  %734 = vmatpush1.msra.mxu0 0.0
  %735 = vmatprep.subr.mxu0 0.0
  %736 = vmatpush1.msra.mxu0 0.0
  %737 = vmatprep.subr.mxu0 0.0
  %738 = vmatpush1.msra.mxu0 0.0
  %739 = vmatprep.subr.mxu0 0.0
  %740 = vmatpush1.msra.mxu0 0.0
  %741 = vmatprep.subr.mxu0 0.0
  %742 = vmatpush1.msra.mxu0 0.0
  %743 = vmatprep.subr.mxu0 0.0
  %744 = vmatpush1.msra.mxu0 0.0
  %745 = vmatprep.subr.mxu0 0.0
  %746 = vmatpush1.msra.mxu0 0.0
  %747 = vmatprep.subr.mxu0 0.0
  %748 = vmatpush1.msra.mxu0 0.0
  %749 = vmatprep.subr.mxu0 0.0
  %750 = vmatpush1.msra.mxu0 0.0
  %751 = vmatprep.subr.mxu0 0.0
  %752 = vmatpush1.msra.mxu0 0.0
  %753 = vmatprep.subr.mxu0 0.0
  %754 = vmatpush1.msra.mxu0 0.0
  %755 = vmatprep.mubr.f32.mxu0 0.0
  %756 = vmatmul.mubr.f32.gmra.mrb[0].mxu0 %v686
  %v757 = vpop.f32.mrb[0].mxu0
  %v758 = vadd.f32 0.0, %v757
  %v759 = vpop.f32.mrb[0].mxu0
  %760 = vmatprep.mubr.f32.mxu0 0.0
  %761 = vmatmul.mubr.f32.gmra.mrb[0].mxu0 %v689
  %v762 = vpop.f32.mrb[0].mxu0
  %v763 = vadd.f32 0.0, %v762
  %v764 = vpop.f32.mrb[0].mxu0
  %765 = vdwg.mxu0
  %v766 = vld [vmem:[%s5] sm:$0xff]
  %v767 = vld [vmem:[%s5 + $0x8] sm:$0xff]
  %v768 = vld [vmem:[%s5 + $0x10] sm:$0xff]
  %v769 = vld [vmem:[%s5 + $0x18] sm:$0xff]
  %v770 = vld [vmem:[%s5 + $0x20] sm:$0xff]
  %v771 = vld [vmem:[%s5 + $0x28] sm:$0xff]
  %v772 = vld [vmem:[%s5 + $0x30] sm:$0xff]
  %v773 = vld [vmem:[%s5 + $0x38] sm:$0xff]
  %v774 = vld [vmem:[%s5 + $0x40] sm:$0xff]
  %v775 = vld [vmem:[%s5 + $0x48] sm:$0xff]
  %v776 = vld [vmem:[%s5 + $0x50] sm:$0xff]
  %v777 = vld [vmem:[%s5 + $0x58] sm:$0xff]
  %v778 = vld [vmem:[%s5 + $0x60] sm:$0xff]
  %v779 = vld [vmem:[%s5 + $0x68] sm:$0xff]
  %v780 = vld [vmem:[%s5 + $0x70] sm:$0xff]
  %v781 = vld [vmem:[%s5 + $0x78] sm:$0xff]
  %s782 = scalar_lea.vmem %s4, 16
  %v783 = vld [vmem:[%s782] sm:$0xff]
  %v784 = vld [vmem:[%s782 + $0x8] sm:$0xff]
  %v786 = vsel %vm684, %v783, 0
  %v789 = vsel %vm684, %v784, 0
  %791 = vmatprep.subr.mxu0 0.0
  %792 = vmatpush1.msra.mxu0 %v678
  %793 = vmatprep.subr.mxu0 0.0
  %794 = vmatpush1.msra.mxu0 %v679
  %795 = vmatprep.subr.mxu0 0.0
  %796 = vmatpush1.msra.mxu0 %v680
  %797 = vmatprep.subr.mxu0 0.0
  %798 = vmatpush1.msra.mxu0 %v681
  %799 = vmatprep.subr.mxu0 0.0
  %800 = vmatpush1.msra.mxu0 0.0
  %801 = vmatprep.subr.mxu0 0.0
  %802 = vmatpush1.msra.mxu0 0.0
  %803 = vmatprep.subr.mxu0 0.0
  %804 = vmatpush1.msra.mxu0 0.0
  %805 = vmatprep.subr.mxu0 0.0
  %806 = vmatpush1.msra.mxu0 0.0
  %807 = vmatprep.subr.mxu0 0.0
  %808 = vmatpush1.msra.mxu0 0.0
  %809 = vmatprep.subr.mxu0 0.0
  %810 = vmatpush1.msra.mxu0 0.0
  %811 = vmatprep.subr.mxu0 0.0
  %812 = vmatpush1.msra.mxu0 0.0
  %813 = vmatprep.subr.mxu0 0.0
  %814 = vmatpush1.msra.mxu0 0.0
  %815 = vmatprep.subr.mxu0 0.0
  %816 = vmatpush1.msra.mxu0 0.0
  %817 = vmatprep.subr.mxu0 0.0
  %818 = vmatpush1.msra.mxu0 0.0
  %819 = vmatprep.subr.mxu0 0.0
  %820 = vmatpush1.msra.mxu0 0.0
  %821 = vmatprep.subr.mxu0 0.0
  %822 = vmatpush1.msra.mxu0 0.0
  %823 = vmatprep.subr.mxu0 0.0
  %824 = vmatpush1.msra.mxu0 0.0
  %825 = vmatprep.subr.mxu0 0.0
  %826 = vmatpush1.msra.mxu0 0.0
  %827 = vmatprep.subr.mxu0 0.0
  %828 = vmatpush1.msra.mxu0 0.0
  %829 = vmatprep.subr.mxu0 0.0
  %830 = vmatpush1.msra.mxu0 0.0
  %831 = vmatprep.subr.mxu0 0.0
  %832 = vmatpush1.msra.mxu0 0.0
  %833 = vmatprep.subr.mxu0 0.0
  %834 = vmatpush1.msra.mxu0 0.0
  %835 = vmatprep.subr.mxu0 0.0
  %836 = vmatpush1.msra.mxu0 0.0
  %837 = vmatprep.subr.mxu0 0.0
  %838 = vmatpush1.msra.mxu0 0.0
  %839 = vmatprep.subr.mxu0 0.0
  %840 = vmatpush1.msra.mxu0 0.0
  %841 = vmatprep.subr.mxu0 0.0
  %842 = vmatpush1.msra.mxu0 0.0
  %843 = vmatprep.subr.mxu0 0.0
  %844 = vmatpush1.msra.mxu0 0.0
  %845 = vmatprep.subr.mxu0 0.0
  %846 = vmatpush1.msra.mxu0 0.0
  %847 = vmatprep.subr.mxu0 0.0
  %848 = vmatpush1.msra.mxu0 0.0
  %849 = vmatprep.subr.mxu0 0.0
  %850 = vmatpush1.msra.mxu0 0.0
  %851 = vmatprep.subr.mxu0 0.0
  %852 = vmatpush1.msra.mxu0 0.0
  %853 = vmatprep.subr.mxu0 0.0
  %854 = vmatpush1.msra.mxu0 0.0
  %855 = vmatprep.mubr.f32.mxu0 0.0
  %856 = vmatmul.mubr.f32.gmra.mrb[0].mxu0 %v786
  %v857 = vpop.f32.mrb[0].mxu0
  %v858 = vadd.f32 0.0, %v857
  %v859 = vpop.f32.mrb[0].mxu0
  %860 = vmatprep.mubr.f32.mxu0 0.0
  %861 = vmatmul.mubr.f32.gmra.mrb[0].mxu0 %v789
  %v862 = vpop.f32.mrb[0].mxu0
  %v863 = vadd.f32 0.0, %v862
  %v864 = vpop.f32.mrb[0].mxu0
  %865 = vdwg.mxu0
  %s866 = scalar_lea.vmem %s5, 128
  %v867 = vld [vmem:[%s866] sm:$0xff]
  %v868 = vld [vmem:[%s866 + $0x8] sm:$0xff]
  %v869 = vld [vmem:[%s866 + $0x10] sm:$0xff]
  %v870 = vld [vmem:[%s866 + $0x18] sm:$0xff]
  %v871 = vld [vmem:[%s866 + $0x20] sm:$0xff]
  %v872 = vld [vmem:[%s866 + $0x28] sm:$0xff]
  %v873 = vld [vmem:[%s866 + $0x30] sm:$0xff]
  %v874 = vld [vmem:[%s866 + $0x38] sm:$0xff]
  %v875 = vld [vmem:[%s866 + $0x40] sm:$0xff]
  %v876 = vld [vmem:[%s866 + $0x48] sm:$0xff]
  %v877 = vld [vmem:[%s866 + $0x50] sm:$0xff]
  %v878 = vld [vmem:[%s866 + $0x58] sm:$0xff]
  %v879 = vld [vmem:[%s866 + $0x60] sm:$0xff]
  %v880 = vld [vmem:[%s866 + $0x68] sm:$0xff]
  %v881 = vld [vmem:[%s866 + $0x70] sm:$0xff]
  %v882 = vld [vmem:[%s866 + $0x78] sm:$0xff]
  %883 = vmatprep.subr.mxu0 0.0
  %884 = vmatpush1.msra.mxu0 %v867
  %885 = vmatprep.subr.mxu0 0.0
  %886 = vmatpush1.msra.mxu0 %v868
  %887 = vmatprep.subr.mxu0 0.0
  %888 = vmatpush1.msra.mxu0 %v869
  %889 = vmatprep.subr.mxu0 0.0
  %890 = vmatpush1.msra.mxu0 %v870
  %891 = vmatprep.subr.mxu0 0.0
  %892 = vmatpush1.msra.mxu0 %v871
  %893 = vmatprep.subr.mxu0 0.0
  %894 = vmatpush1.msra.mxu0 %v872
  %895 = vmatprep.subr.mxu0 0.0
  %896 = vmatpush1.msra.mxu0 %v873
  %897 = vmatprep.subr.mxu0 0.0
  %898 = vmatpush1.msra.mxu0 %v874
  %899 = vmatprep.subr.mxu0 0.0
  %900 = vmatpush1.msra.mxu0 %v875
  %901 = vmatprep.subr.mxu0 0.0
  %902 = vmatpush1.msra.mxu0 %v876
  %903 = vmatprep.subr.mxu0 0.0
  %904 = vmatpush1.msra.mxu0 %v877
  %905 = vmatprep.subr.mxu0 0.0
  %906 = vmatpush1.msra.mxu0 %v878
  %907 = vmatprep.subr.mxu0 0.0
  %908 = vmatpush1.msra.mxu0 %v879
  %909 = vmatprep.subr.mxu0 0.0
  %910 = vmatpush1.msra.mxu0 %v880
  %911 = vmatprep.subr.mxu0 0.0
  %912 = vmatpush1.msra.mxu0 %v881
  %913 = vmatprep.subr.mxu0 0.0
  %914 = vmatpush1.msra.mxu0 %v882
  %915 = vmatprep.subr.mxu0 0.0
  %916 = vmatpush1.msra.mxu0 0.0
  %917 = vmatprep.subr.mxu0 0.0
  %918 = vmatpush1.msra.mxu0 0.0
  %919 = vmatprep.subr.mxu0 0.0
  %920 = vmatpush1.msra.mxu0 0.0
  %921 = vmatprep.subr.mxu0 0.0
  %922 = vmatpush1.msra.mxu0 0.0
  %923 = vmatprep.subr.mxu0 0.0
  %924 = vmatpush1.msra.mxu0 0.0
  %925 = vmatprep.subr.mxu0 0.0
  %926 = vmatpush1.msra.mxu0 0.0
  %927 = vmatprep.subr.mxu0 0.0
  %928 = vmatpush1.msra.mxu0 0.0
  %929 = vmatprep.subr.mxu0 0.0
  %930 = vmatpush1.msra.mxu0 0.0
  %931 = vmatprep.subr.mxu0 0.0
  %932 = vmatpush1.msra.mxu0 0.0
  %933 = vmatprep.subr.mxu0 0.0
  %934 = vmatpush1.msra.mxu0 0.0
  %935 = vmatprep.subr.mxu0 0.0
  %936 = vmatpush1.msra.mxu0 0.0
  %937 = vmatprep.subr.mxu0 0.0
  %938 = vmatpush1.msra.mxu0 0.0
  %939 = vmatprep.subr.mxu0 0.0
  %940 = vmatpush1.msra.mxu0 0.0
  %941 = vmatprep.subr.mxu0 0.0
  %942 = vmatpush1.msra.mxu0 0.0
  %943 = vmatprep.subr.mxu0 0.0
  %944 = vmatpush1.msra.mxu0 0.0
  %945 = vmatprep.subr.mxu0 0.0
  %946 = vmatpush1.msra.mxu0 0.0
  %947 = vmatprep.mubr.f32.mxu0 0.0
  %948 = vmatmul.mubr.f32.gmra.mrb[0].mxu0 %v858
  %v949 = vpop.f32.mrb[0].mxu0
  %v950 = vadd.f32 0.0, %v949
  %v951 = vpop.f32.mrb[0].mxu0
  %952 = vmatprep.mubr.f32.mxu0 0.0
  %953 = vmatmul.mubr.f32.gmra.mrb[0].mxu0 %v863
  %v954 = vpop.f32.mrb[0].mxu0
  %v955 = vadd.f32 0.0, %v954
  %v956 = vpop.f32.mrb[0].mxu0
  %957 = vdwg.mxu0
  %958 = vmatprep.subr.mxu0 0.0
  %959 = vmatpush1.msra.mxu0 %v766
  %960 = vmatprep.subr.mxu0 0.0
  %961 = vmatpush1.msra.mxu0 %v767
  %962 = vmatprep.subr.mxu0 0.0
  %963 = vmatpush1.msra.mxu0 %v768
  %964 = vmatprep.subr.mxu0 0.0
  %965 = vmatpush1.msra.mxu0 %v769
  %966 = vmatprep.subr.mxu0 0.0
  %967 = vmatpush1.msra.mxu0 %v770
  %968 = vmatprep.subr.mxu0 0.0
  %969 = vmatpush1.msra.mxu0 %v771
  %970 = vmatprep.subr.mxu0 0.0
  %971 = vmatpush1.msra.mxu0 %v772
  %972 = vmatprep.subr.mxu0 0.0
  %973 = vmatpush1.msra.mxu0 %v773
  %974 = vmatprep.subr.mxu0 0.0
  %975 = vmatpush1.msra.mxu0 %v774
  %976 = vmatprep.subr.mxu0 0.0
  %977 = vmatpush1.msra.mxu0 %v775
  %978 = vmatprep.subr.mxu0 0.0
  %979 = vmatpush1.msra.mxu0 %v776
  %980 = vmatprep.subr.mxu0 0.0
  %981 = vmatpush1.msra.mxu0 %v777
  %982 = vmatprep.subr.mxu0 0.0
  %983 = vmatpush1.msra.mxu0 %v778
  %984 = vmatprep.subr.mxu0 0.0
  %985 = vmatpush1.msra.mxu0 %v779
  %986 = vmatprep.subr.mxu0 0.0
  %987 = vmatpush1.msra.mxu0 %v780
  %988 = vmatprep.subr.mxu0 0.0
  %989 = vmatpush1.msra.mxu0 %v781
  %990 = vmatprep.subr.mxu0 0.0
  %991 = vmatpush1.msra.mxu0 0.0
  %992 = vmatprep.subr.mxu0 0.0
  %993 = vmatpush1.msra.mxu0 0.0
  %994 = vmatprep.subr.mxu0 0.0
  %995 = vmatpush1.msra.mxu0 0.0
  %996 = vmatprep.subr.mxu0 0.0
  %997 = vmatpush1.msra.mxu0 0.0
  %998 = vmatprep.subr.mxu0 0.0
  %999 = vmatpush1.msra.mxu0 0.0
  %1000 = vmatprep.subr.mxu0 0.0
  %1001 = vmatpush1.msra.mxu0 0.0
  %1002 = vmatprep.subr.mxu0 0.0
  %1003 = vmatpush1.msra.mxu0 0.0
  %1004 = vmatprep.subr.mxu0 0.0
  %1005 = vmatpush1.msra.mxu0 0.0
  %1006 = vmatprep.subr.mxu0 0.0
  %1007 = vmatpush1.msra.mxu0 0.0
  %1008 = vmatprep.subr.mxu0 0.0
  %1009 = vmatpush1.msra.mxu0 0.0
  %1010 = vmatprep.subr.mxu0 0.0
  %1011 = vmatpush1.msra.mxu0 0.0
  %1012 = vmatprep.subr.mxu0 0.0
  %1013 = vmatpush1.msra.mxu0 0.0
  %1014 = vmatprep.subr.mxu0 0.0
  %1015 = vmatpush1.msra.mxu0 0.0
  %1016 = vmatprep.subr.mxu0 0.0
  %1017 = vmatpush1.msra.mxu0 0.0
  %1018 = vmatprep.subr.mxu0 0.0
  %1019 = vmatpush1.msra.mxu0 0.0
  %1020 = vmatprep.subr.mxu0 0.0
  %1021 = vmatpush1.msra.mxu0 0.0
  %1022 = vmatprep.mubr.f32.mxu0 0.0
  %1023 = vmatmul.mubr.f32.gmra.mrb[0].mxu0 %v758
  %v1024 = vpop.f32.mrb[0].mxu0
  %v1025 = vadd.f32 %v950, %v1024
  %v1026 = vpop.f32.mrb[0].mxu0
  %1027 = vmatprep.mubr.f32.mxu0 0.0
  %1028 = vmatmul.mubr.f32.gmra.mrb[0].mxu0 %v763
  %v1029 = vpop.f32.mrb[0].mxu0
  %v1030 = vadd.f32 %v955, %v1029
  %v1031 = vpop.f32.mrb[0].mxu0
  %1032 = vdwg.mxu0
  %s1033 = scalar_lea.vmem %s4, 32
  %v1034 = vld [vmem:[%s1033] sm:$0xff]
  %v1035 = vld [vmem:[%s1033 + $0x8] sm:$0xff]
  %v1037 = vsel %vm684, %v1034, 0
  %v1040 = vsel %vm684, %v1035, 0
  %1042 = vmatprep.subr.mxu0 0.0
  %1043 = vmatpush1.msra.mxu0 %v678
  %1044 = vmatprep.subr.mxu0 0.0
  %1045 = vmatpush1.msra.mxu0 %v679
  %1046 = vmatprep.subr.mxu0 0.0
  %1047 = vmatpush1.msra.mxu0 %v680
  %1048 = vmatprep.subr.mxu0 0.0
  %1049 = vmatpush1.msra.mxu0 %v681
  %1050 = vmatprep.subr.mxu0 0.0
  %1051 = vmatpush1.msra.mxu0 0.0
  %1052 = vmatprep.subr.mxu0 0.0
  %1053 = vmatpush1.msra.mxu0 0.0
  %1054 = vmatprep.subr.mxu0 0.0
  %1055 = vmatpush1.msra.mxu0 0.0
  %1056 = vmatprep.subr.mxu0 0.0
  %1057 = vmatpush1.msra.mxu0 0.0
  %1058 = vmatprep.subr.mxu0 0.0
  %1059 = vmatpush1.msra.mxu0 0.0
  %1060 = vmatprep.subr.mxu0 0.0
  %1061 = vmatpush1.msra.mxu0 0.0
  %1062 = vmatprep.subr.mxu0 0.0
  %1063 = vmatpush1.msra.mxu0 0.0
  %1064 = vmatprep.subr.mxu0 0.0
  %1065 = vmatpush1.msra.mxu0 0.0
  %1066 = vmatprep.subr.mxu0 0.0
  %1067 = vmatpush1.msra.mxu0 0.0
  %1068 = vmatprep.subr.mxu0 0.0
  %1069 = vmatpush1.msra.mxu0 0.0
  %1070 = vmatprep.subr.mxu0 0.0
  %1071 = vmatpush1.msra.mxu0 0.0
  %1072 = vmatprep.subr.mxu0 0.0
  %1073 = vmatpush1.msra.mxu0 0.0
  %1074 = vmatprep.subr.mxu0 0.0
  %1075 = vmatpush1.msra.mxu0 0.0
  %1076 = vmatprep.subr.mxu0 0.0
  %1077 = vmatpush1.msra.mxu0 0.0
  %1078 = vmatprep.subr.mxu0 0.0
  %1079 = vmatpush1.msra.mxu0 0.0
  %1080 = vmatprep.subr.mxu0 0.0
  %1081 = vmatpush1.msra.mxu0 0.0
  %1082 = vmatprep.subr.mxu0 0.0
  %1083 = vmatpush1.msra.mxu0 0.0
  %1084 = vmatprep.subr.mxu0 0.0
  %1085 = vmatpush1.msra.mxu0 0.0
  %1086 = vmatprep.subr.mxu0 0.0
  %1087 = vmatpush1.msra.mxu0 0.0
  %1088 = vmatprep.subr.mxu0 0.0
  %1089 = vmatpush1.msra.mxu0 0.0
  %1090 = vmatprep.subr.mxu0 0.0
  %1091 = vmatpush1.msra.mxu0 0.0
  %1092 = vmatprep.subr.mxu0 0.0
  %1093 = vmatpush1.msra.mxu0 0.0
  %1094 = vmatprep.subr.mxu0 0.0
  %1095 = vmatpush1.msra.mxu0 0.0
  %1096 = vmatprep.subr.mxu0 0.0
  %1097 = vmatpush1.msra.mxu0 0.0
  %1098 = vmatprep.subr.mxu0 0.0
  %1099 = vmatpush1.msra.mxu0 0.0
  %1100 = vmatprep.subr.mxu0 0.0
  %1101 = vmatpush1.msra.mxu0 0.0
  %1102 = vmatprep.subr.mxu0 0.0
  %1103 = vmatpush1.msra.mxu0 0.0
  %1104 = vmatprep.subr.mxu0 0.0
  %1105 = vmatpush1.msra.mxu0 0.0
  %1106 = vmatprep.mubr.f32.mxu0 0.0
  %1107 = vmatmul.mubr.f32.gmra.mrb[0].mxu0 %v1037
  %v1108 = vpop.f32.mrb[0].mxu0
  %v1109 = vadd.f32 0.0, %v1108
  %v1110 = vpop.f32.mrb[0].mxu0
  %1111 = vmatprep.mubr.f32.mxu0 0.0
  %1112 = vmatmul.mubr.f32.gmra.mrb[0].mxu0 %v1040
  %v1113 = vpop.f32.mrb[0].mxu0
  %v1114 = vadd.f32 0.0, %v1113
  %v1115 = vpop.f32.mrb[0].mxu0
  %1116 = vdwg.mxu0
  %s1117 = scalar_lea.vmem %s5, 256
  %v1118 = vld [vmem:[%s1117] sm:$0xff]
  %v1119 = vld [vmem:[%s1117 + $0x8] sm:$0xff]
  %v1120 = vld [vmem:[%s1117 + $0x10] sm:$0xff]
  %v1121 = vld [vmem:[%s1117 + $0x18] sm:$0xff]
  %v1122 = vld [vmem:[%s1117 + $0x20] sm:$0xff]
  %v1123 = vld [vmem:[%s1117 + $0x28] sm:$0xff]
  %v1124 = vld [vmem:[%s1117 + $0x30] sm:$0xff]
  %v1125 = vld [vmem:[%s1117 + $0x38] sm:$0xff]
  %v1126 = vld [vmem:[%s1117 + $0x40] sm:$0xff]
  %v1127 = vld [vmem:[%s1117 + $0x48] sm:$0xff]
  %v1128 = vld [vmem:[%s1117 + $0x50] sm:$0xff]
  %v1129 = vld [vmem:[%s1117 + $0x58] sm:$0xff]
  %v1130 = vld [vmem:[%s1117 + $0x60] sm:$0xff]
  %v1131 = vld [vmem:[%s1117 + $0x68] sm:$0xff]
  %v1132 = vld [vmem:[%s1117 + $0x70] sm:$0xff]
  %v1133 = vld [vmem:[%s1117 + $0x78] sm:$0xff]
  %1134 = vmatprep.subr.mxu0 0.0
  %1135 = vmatpush1.msra.mxu0 %v1118
  %1136 = vmatprep.subr.mxu0 0.0
  %1137 = vmatpush1.msra.mxu0 %v1119
  %1138 = vmatprep.subr.mxu0 0.0
  %1139 = vmatpush1.msra.mxu0 %v1120
  %1140 = vmatprep.subr.mxu0 0.0
  %1141 = vmatpush1.msra.mxu0 %v1121
  %1142 = vmatprep.subr.mxu0 0.0
  %1143 = vmatpush1.msra.mxu0 %v1122
  %1144 = vmatprep.subr.mxu0 0.0
  %1145 = vmatpush1.msra.mxu0 %v1123
  %1146 = vmatprep.subr.mxu0 0.0
  %1147 = vmatpush1.msra.mxu0 %v1124
  %1148 = vmatprep.subr.mxu0 0.0
  %1149 = vmatpush1.msra.mxu0 %v1125
  %1150 = vmatprep.subr.mxu0 0.0
  %1151 = vmatpush1.msra.mxu0 %v1126
  %1152 = vmatprep.subr.mxu0 0.0
  %1153 = vmatpush1.msra.mxu0 %v1127
  %1154 = vmatprep.subr.mxu0 0.0
  %1155 = vmatpush1.msra.mxu0 %v1128
  %1156 = vmatprep.subr.mxu0 0.0
  %1157 = vmatpush1.msra.mxu0 %v1129
  %1158 = vmatprep.subr.mxu0 0.0
  %1159 = vmatpush1.msra.mxu0 %v1130
  %1160 = vmatprep.subr.mxu0 0.0
  %1161 = vmatpush1.msra.mxu0 %v1131
  %1162 = vmatprep.subr.mxu0 0.0
  %1163 = vmatpush1.msra.mxu0 %v1132
  %1164 = vmatprep.subr.mxu0 0.0
  %1165 = vmatpush1.msra.mxu0 %v1133
  %1166 = vmatprep.subr.mxu0 0.0
  %1167 = vmatpush1.msra.mxu0 0.0
  %1168 = vmatprep.subr.mxu0 0.0
  %1169 = vmatpush1.msra.mxu0 0.0
  %1170 = vmatprep.subr.mxu0 0.0
  %1171 = vmatpush1.msra.mxu0 0.0
  %1172 = vmatprep.subr.mxu0 0.0
  %1173 = vmatpush1.msra.mxu0 0.0
  %1174 = vmatprep.subr.mxu0 0.0
  %1175 = vmatpush1.msra.mxu0 0.0
  %1176 = vmatprep.subr.mxu0 0.0
  %1177 = vmatpush1.msra.mxu0 0.0
  %1178 = vmatprep.subr.mxu0 0.0
  %1179 = vmatpush1.msra.mxu0 0.0
  %1180 = vmatprep.subr.mxu0 0.0
  %1181 = vmatpush1.msra.mxu0 0.0
  %1182 = vmatprep.subr.mxu0 0.0
  %1183 = vmatpush1.msra.mxu0 0.0
  %1184 = vmatprep.subr.mxu0 0.0
  %1185 = vmatpush1.msra.mxu0 0.0
  %1186 = vmatprep.subr.mxu0 0.0
  %1187 = vmatpush1.msra.mxu0 0.0
  %1188 = vmatprep.subr.mxu0 0.0
  %1189 = vmatpush1.msra.mxu0 0.0
  %1190 = vmatprep.subr.mxu0 0.0
  %1191 = vmatpush1.msra.mxu0 0.0
  %1192 = vmatprep.subr.mxu0 0.0
  %1193 = vmatpush1.msra.mxu0 0.0
  %1194 = vmatprep.subr.mxu0 0.0
  %1195 = vmatpush1.msra.mxu0 0.0
  %1196 = vmatprep.subr.mxu0 0.0
  %1197 = vmatpush1.msra.mxu0 0.0
  %1198 = vmatprep.mubr.f32.mxu0 0.0
  %1199 = vmatmul.mubr.f32.gmra.mrb[0].mxu0 %v1109
  %v1200 = vpop.f32.mrb[0].mxu0
  %v1201 = vadd.f32 0.0, %v1200
  %v1202 = vpop.f32.mrb[0].mxu0
  %1203 = vmatprep.mubr.f32.mxu0 0.0
  %1204 = vmatmul.mubr.f32.gmra.mrb[0].mxu0 %v1114
  %v1205 = vpop.f32.mrb[0].mxu0
  %v1206 = vadd.f32 0.0, %v1205
  %v1207 = vpop.f32.mrb[0].mxu0
  %1208 = vdwg.mxu0
  %v1209 = vadd.f32 %v1025, %v1201
  %v1210 = vadd.f32 %v1030, %v1206
  %v1211 = vld [vmem:[%s6] sm:$0x1]
  %v1213 = vlaneseq
  %v1214 = vshrl.u32 %v1213, 7
  %v1215 = vsub.s32 0, %v1214
  %v1216 = vrot.slane %v1211, %v1215
  %v1218 = vadd.f32 %v1209, %v1216
  %v1219 = vadd.f32 %v1210, %v1216
  %v1220 = vmax.f32 %v1218, 0.0
  %v1221 = vmax.f32 %v1219, 0.0
  %v1222 = vld [vmem:[%s7] sm:$0xff]
  %vm1223 = vcmask 130048
  %v1225 = vsel %vm1223, %v1222, 0
  %1227 = vmatprep.subr.mxu0 0.0
  %1228 = vmatpush1.msra.mxu0 %v1220
  %1229 = vmatprep.subr.mxu0 0.0
  %1230 = vmatpush1.msra.mxu0 %v1221
  %1231 = vmatprep.subr.mxu0 0.0
  %1232 = vmatpush1.msra.mxu0 0.0
  %1233 = vmatprep.subr.mxu0 0.0
  %1234 = vmatpush1.msra.mxu0 0.0
  %1235 = vmatprep.subr.mxu0 0.0
  %1236 = vmatpush1.msra.mxu0 0.0
  %1237 = vmatprep.subr.mxu0 0.0
  %1238 = vmatpush1.msra.mxu0 0.0
  %1239 = vmatprep.subr.mxu0 0.0
  %1240 = vmatpush1.msra.mxu0 0.0
  %1241 = vmatprep.subr.mxu0 0.0
  %1242 = vmatpush1.msra.mxu0 0.0
  %1243 = vmatprep.subr.mxu0 0.0
  %1244 = vmatpush1.msra.mxu0 0.0
  %1245 = vmatprep.subr.mxu0 0.0
  %1246 = vmatpush1.msra.mxu0 0.0
  %1247 = vmatprep.subr.mxu0 0.0
  %1248 = vmatpush1.msra.mxu0 0.0
  %1249 = vmatprep.subr.mxu0 0.0
  %1250 = vmatpush1.msra.mxu0 0.0
  %1251 = vmatprep.subr.mxu0 0.0
  %1252 = vmatpush1.msra.mxu0 0.0
  %1253 = vmatprep.subr.mxu0 0.0
  %1254 = vmatpush1.msra.mxu0 0.0
  %1255 = vmatprep.subr.mxu0 0.0
  %1256 = vmatpush1.msra.mxu0 0.0
  %1257 = vmatprep.subr.mxu0 0.0
  %1258 = vmatpush1.msra.mxu0 0.0
  %1259 = vmatprep.subr.mxu0 0.0
  %1260 = vmatpush1.msra.mxu0 0.0
  %1261 = vmatprep.subr.mxu0 0.0
  %1262 = vmatpush1.msra.mxu0 0.0
  %1263 = vmatprep.subr.mxu0 0.0
  %1264 = vmatpush1.msra.mxu0 0.0
  %1265 = vmatprep.subr.mxu0 0.0
  %1266 = vmatpush1.msra.mxu0 0.0
  %1267 = vmatprep.subr.mxu0 0.0
  %1268 = vmatpush1.msra.mxu0 0.0
  %1269 = vmatprep.subr.mxu0 0.0
  %1270 = vmatpush1.msra.mxu0 0.0
  %1271 = vmatprep.subr.mxu0 0.0
  %1272 = vmatpush1.msra.mxu0 0.0
  %1273 = vmatprep.subr.mxu0 0.0
  %1274 = vmatpush1.msra.mxu0 0.0
  %1275 = vmatprep.subr.mxu0 0.0
  %1276 = vmatpush1.msra.mxu0 0.0
  %1277 = vmatprep.subr.mxu0 0.0
  %1278 = vmatpush1.msra.mxu0 0.0
  %1279 = vmatprep.subr.mxu0 0.0
  %1280 = vmatpush1.msra.mxu0 0.0
  %1281 = vmatprep.subr.mxu0 0.0
  %1282 = vmatpush1.msra.mxu0 0.0
  %1283 = vmatprep.subr.mxu0 0.0
  %1284 = vmatpush1.msra.mxu0 0.0
  %1285 = vmatprep.subr.mxu0 0.0
  %1286 = vmatpush1.msra.mxu0 0.0
  %1287 = vmatprep.subr.mxu0 0.0
  %1288 = vmatpush1.msra.mxu0 0.0
  %1289 = vmatprep.subr.mxu0 0.0
  %1290 = vmatpush1.msra.mxu0 0.0
  %1291 = vmatprep.mubr.f32.mxu0 0.0
  %1292 = vmatmul.mubr.f32.gmra.mrb[0].mxu0 %v1225
  %v1293 = vpop.f32.mrb[0].mxu0
  %v1294 = vadd.f32 0.0, %v1293
  %v1295 = vpop.f32.mrb[0].mxu0
  %1296 = vdwg.mxu0
  %v1297 = vld [vmem:[%s8] sm:$0xff]
  %v1298 = vld [vmem:[%s8 + $0x8] sm:$0xff]
  %v1299 = vld [vmem:[%s8 + $0x10] sm:$0xff]
  %v1300 = vld [vmem:[%s8 + $0x18] sm:$0xff]
  %v1301 = vld [vmem:[%s8 + $0x20] sm:$0xff]
  %v1302 = vld [vmem:[%s8 + $0x28] sm:$0xff]
  %v1303 = vld [vmem:[%s8 + $0x30] sm:$0xff]
  %v1304 = vld [vmem:[%s8 + $0x38] sm:$0xff]
  %v1305 = vld [vmem:[%s8 + $0x40] sm:$0xff]
  %v1306 = vld [vmem:[%s8 + $0x48] sm:$0xff]
  %v1307 = vld [vmem:[%s8 + $0x50] sm:$0xff]
  %v1308 = vld [vmem:[%s8 + $0x58] sm:$0xff]
  %v1309 = vld [vmem:[%s8 + $0x60] sm:$0xff]
  %v1310 = vld [vmem:[%s8 + $0x68] sm:$0xff]
  %v1311 = vld [vmem:[%s8 + $0x70] sm:$0xff]
  %v1312 = vld [vmem:[%s8 + $0x78] sm:$0xff]
  %s1313 = scalar_lea.vmem %s7, 8
  %v1314 = vld [vmem:[%s1313] sm:$0xff]
  %v1316 = vsel %vm1223, %v1314, 0
  %1318 = vmatprep.subr.mxu0 0.0
  %1319 = vmatpush1.msra.mxu0 %v1220
  %1320 = vmatprep.subr.mxu0 0.0
  %1321 = vmatpush1.msra.mxu0 %v1221
  %1322 = vmatprep.subr.mxu0 0.0
  %1323 = vmatpush1.msra.mxu0 0.0
  %1324 = vmatprep.subr.mxu0 0.0
  %1325 = vmatpush1.msra.mxu0 0.0
  %1326 = vmatprep.subr.mxu0 0.0
  %1327 = vmatpush1.msra.mxu0 0.0
  %1328 = vmatprep.subr.mxu0 0.0
  %1329 = vmatpush1.msra.mxu0 0.0
  %1330 = vmatprep.subr.mxu0 0.0
  %1331 = vmatpush1.msra.mxu0 0.0
  %1332 = vmatprep.subr.mxu0 0.0
  %1333 = vmatpush1.msra.mxu0 0.0
  %1334 = vmatprep.subr.mxu0 0.0
  %1335 = vmatpush1.msra.mxu0 0.0
  %1336 = vmatprep.subr.mxu0 0.0
  %1337 = vmatpush1.msra.mxu0 0.0
  %1338 = vmatprep.subr.mxu0 0.0
  %1339 = vmatpush1.msra.mxu0 0.0
  %1340 = vmatprep.subr.mxu0 0.0
  %1341 = vmatpush1.msra.mxu0 0.0
  %1342 = vmatprep.subr.mxu0 0.0
  %1343 = vmatpush1.msra.mxu0 0.0
  %1344 = vmatprep.subr.mxu0 0.0
  %1345 = vmatpush1.msra.mxu0 0.0
  %1346 = vmatprep.subr.mxu0 0.0
  %1347 = vmatpush1.msra.mxu0 0.0
  %1348 = vmatprep.subr.mxu0 0.0
  %1349 = vmatpush1.msra.mxu0 0.0
  %1350 = vmatprep.subr.mxu0 0.0
  %1351 = vmatpush1.msra.mxu0 0.0
  %1352 = vmatprep.subr.mxu0 0.0
  %1353 = vmatpush1.msra.mxu0 0.0
  %1354 = vmatprep.subr.mxu0 0.0
  %1355 = vmatpush1.msra.mxu0 0.0
  %1356 = vmatprep.subr.mxu0 0.0
  %1357 = vmatpush1.msra.mxu0 0.0
  %1358 = vmatprep.subr.mxu0 0.0
  %1359 = vmatpush1.msra.mxu0 0.0
  %1360 = vmatprep.subr.mxu0 0.0
  %1361 = vmatpush1.msra.mxu0 0.0
  %1362 = vmatprep.subr.mxu0 0.0
  %1363 = vmatpush1.msra.mxu0 0.0
  %1364 = vmatprep.subr.mxu0 0.0
  %1365 = vmatpush1.msra.mxu0 0.0
  %1366 = vmatprep.subr.mxu0 0.0
  %1367 = vmatpush1.msra.mxu0 0.0
  %1368 = vmatprep.subr.mxu0 0.0
  %1369 = vmatpush1.msra.mxu0 0.0
  %1370 = vmatprep.subr.mxu0 0.0
  %1371 = vmatpush1.msra.mxu0 0.0
  %1372 = vmatprep.subr.mxu0 0.0
  %1373 = vmatpush1.msra.mxu0 0.0
  %1374 = vmatprep.subr.mxu0 0.0
  %1375 = vmatpush1.msra.mxu0 0.0
  %1376 = vmatprep.subr.mxu0 0.0
  %1377 = vmatpush1.msra.mxu0 0.0
  %1378 = vmatprep.subr.mxu0 0.0
  %1379 = vmatpush1.msra.mxu0 0.0
  %1380 = vmatprep.subr.mxu0 0.0
  %1381 = vmatpush1.msra.mxu0 0.0
  %1382 = vmatprep.mubr.f32.mxu0 0.0
  %1383 = vmatmul.mubr.f32.gmra.mrb[0].mxu0 %v1316
  %v1384 = vpop.f32.mrb[0].mxu0
  %v1385 = vadd.f32 0.0, %v1384
  %v1386 = vpop.f32.mrb[0].mxu0
  %1387 = vdwg.mxu0
  %s1388 = scalar_lea.vmem %s8, 128
  %v1389 = vld [vmem:[%s1388] sm:$0xff]
  %v1390 = vld [vmem:[%s1388 + $0x8] sm:$0xff]
  %v1391 = vld [vmem:[%s1388 + $0x10] sm:$0xff]
  %v1392 = vld [vmem:[%s1388 + $0x18] sm:$0xff]
  %v1393 = vld [vmem:[%s1388 + $0x20] sm:$0xff]
  %v1394 = vld [vmem:[%s1388 + $0x28] sm:$0xff]
  %v1395 = vld [vmem:[%s1388 + $0x30] sm:$0xff]
  %v1396 = vld [vmem:[%s1388 + $0x38] sm:$0xff]
  %v1397 = vld [vmem:[%s1388 + $0x40] sm:$0xff]
  %v1398 = vld [vmem:[%s1388 + $0x48] sm:$0xff]
  %v1399 = vld [vmem:[%s1388 + $0x50] sm:$0xff]
  %v1400 = vld [vmem:[%s1388 + $0x58] sm:$0xff]
  %v1401 = vld [vmem:[%s1388 + $0x60] sm:$0xff]
  %v1402 = vld [vmem:[%s1388 + $0x68] sm:$0xff]
  %v1403 = vld [vmem:[%s1388 + $0x70] sm:$0xff]
  %v1404 = vld [vmem:[%s1388 + $0x78] sm:$0xff]
  %1405 = vmatprep.subr.mxu0 0.0
  %1406 = vmatpush1.msra.mxu0 %v1389
  %1407 = vmatprep.subr.mxu0 0.0
  %1408 = vmatpush1.msra.mxu0 %v1390
  %1409 = vmatprep.subr.mxu0 0.0
  %1410 = vmatpush1.msra.mxu0 %v1391
  %1411 = vmatprep.subr.mxu0 0.0
  %1412 = vmatpush1.msra.mxu0 %v1392
  %1413 = vmatprep.subr.mxu0 0.0
  %1414 = vmatpush1.msra.mxu0 %v1393
  %1415 = vmatprep.subr.mxu0 0.0
  %1416 = vmatpush1.msra.mxu0 %v1394
  %1417 = vmatprep.subr.mxu0 0.0
  %1418 = vmatpush1.msra.mxu0 %v1395
  %1419 = vmatprep.subr.mxu0 0.0
  %1420 = vmatpush1.msra.mxu0 %v1396
  %1421 = vmatprep.subr.mxu0 0.0
  %1422 = vmatpush1.msra.mxu0 %v1397
  %1423 = vmatprep.subr.mxu0 0.0
  %1424 = vmatpush1.msra.mxu0 %v1398
  %1425 = vmatprep.subr.mxu0 0.0
  %1426 = vmatpush1.msra.mxu0 %v1399
  %1427 = vmatprep.subr.mxu0 0.0
  %1428 = vmatpush1.msra.mxu0 %v1400
  %1429 = vmatprep.subr.mxu0 0.0
  %1430 = vmatpush1.msra.mxu0 %v1401
  %1431 = vmatprep.subr.mxu0 0.0
  %1432 = vmatpush1.msra.mxu0 %v1402
  %1433 = vmatprep.subr.mxu0 0.0
  %1434 = vmatpush1.msra.mxu0 %v1403
  %1435 = vmatprep.subr.mxu0 0.0
  %1436 = vmatpush1.msra.mxu0 %v1404
  %1437 = vmatprep.subr.mxu0 0.0
  %1438 = vmatpush1.msra.mxu0 0.0
  %1439 = vmatprep.subr.mxu0 0.0
  %1440 = vmatpush1.msra.mxu0 0.0
  %1441 = vmatprep.subr.mxu0 0.0
  %1442 = vmatpush1.msra.mxu0 0.0
  %1443 = vmatprep.subr.mxu0 0.0
  %1444 = vmatpush1.msra.mxu0 0.0
  %1445 = vmatprep.subr.mxu0 0.0
  %1446 = vmatpush1.msra.mxu0 0.0
  %1447 = vmatprep.subr.mxu0 0.0
  %1448 = vmatpush1.msra.mxu0 0.0
  %1449 = vmatprep.subr.mxu0 0.0
  %1450 = vmatpush1.msra.mxu0 0.0
  %1451 = vmatprep.subr.mxu0 0.0
  %1452 = vmatpush1.msra.mxu0 0.0
  %1453 = vmatprep.subr.mxu0 0.0
  %1454 = vmatpush1.msra.mxu0 0.0
  %1455 = vmatprep.subr.mxu0 0.0
  %1456 = vmatpush1.msra.mxu0 0.0
  %1457 = vmatprep.subr.mxu0 0.0
  %1458 = vmatpush1.msra.mxu0 0.0
  %1459 = vmatprep.subr.mxu0 0.0
  %1460 = vmatpush1.msra.mxu0 0.0
  %1461 = vmatprep.subr.mxu0 0.0
  %1462 = vmatpush1.msra.mxu0 0.0
  %1463 = vmatprep.subr.mxu0 0.0
  %1464 = vmatpush1.msra.mxu0 0.0
  %1465 = vmatprep.subr.mxu0 0.0
  %1466 = vmatpush1.msra.mxu0 0.0
  %1467 = vmatprep.subr.mxu0 0.0
  %1468 = vmatpush1.msra.mxu0 0.0
  %1469 = vmatprep.mubr.f32.mxu0 0.0
  %1470 = vmatmul.mubr.f32.gmra.mrb[0].mxu0 %v1385
  %v1471 = vpop.f32.mrb[0].mxu0
  %v1472 = vadd.f32 0.0, %v1471
  %v1473 = vpop.f32.mrb[0].mxu0
  %1474 = vdwg.mxu0
  %1475 = vmatprep.subr.mxu0 0.0
  %1476 = vmatpush1.msra.mxu0 %v1297
  %1477 = vmatprep.subr.mxu0 0.0
  %1478 = vmatpush1.msra.mxu0 %v1298
  %1479 = vmatprep.subr.mxu0 0.0
  %1480 = vmatpush1.msra.mxu0 %v1299
  %1481 = vmatprep.subr.mxu0 0.0
  %1482 = vmatpush1.msra.mxu0 %v1300
  %1483 = vmatprep.subr.mxu0 0.0
  %1484 = vmatpush1.msra.mxu0 %v1301
  %1485 = vmatprep.subr.mxu0 0.0
  %1486 = vmatpush1.msra.mxu0 %v1302
  %1487 = vmatprep.subr.mxu0 0.0
  %1488 = vmatpush1.msra.mxu0 %v1303
  %1489 = vmatprep.subr.mxu0 0.0
  %1490 = vmatpush1.msra.mxu0 %v1304
  %1491 = vmatprep.subr.mxu0 0.0
  %1492 = vmatpush1.msra.mxu0 %v1305
  %1493 = vmatprep.subr.mxu0 0.0
  %1494 = vmatpush1.msra.mxu0 %v1306
  %1495 = vmatprep.subr.mxu0 0.0
  %1496 = vmatpush1.msra.mxu0 %v1307
  %1497 = vmatprep.subr.mxu0 0.0
  %1498 = vmatpush1.msra.mxu0 %v1308
  %1499 = vmatprep.subr.mxu0 0.0
  %1500 = vmatpush1.msra.mxu0 %v1309
  %1501 = vmatprep.subr.mxu0 0.0
  %1502 = vmatpush1.msra.mxu0 %v1310
  %1503 = vmatprep.subr.mxu0 0.0
  %1504 = vmatpush1.msra.mxu0 %v1311
  %1505 = vmatprep.subr.mxu0 0.0
  %1506 = vmatpush1.msra.mxu0 %v1312
  %1507 = vmatprep.subr.mxu0 0.0
  %1508 = vmatpush1.msra.mxu0 0.0
  %1509 = vmatprep.subr.mxu0 0.0
  %1510 = vmatpush1.msra.mxu0 0.0
  %1511 = vmatprep.subr.mxu0 0.0
  %1512 = vmatpush1.msra.mxu0 0.0
  %1513 = vmatprep.subr.mxu0 0.0
  %1514 = vmatpush1.msra.mxu0 0.0
  %1515 = vmatprep.subr.mxu0 0.0
  %1516 = vmatpush1.msra.mxu0 0.0
  %1517 = vmatprep.subr.mxu0 0.0
  %1518 = vmatpush1.msra.mxu0 0.0
  %1519 = vmatprep.subr.mxu0 0.0
  %1520 = vmatpush1.msra.mxu0 0.0
  %1521 = vmatprep.subr.mxu0 0.0
  %1522 = vmatpush1.msra.mxu0 0.0
  %1523 = vmatprep.subr.mxu0 0.0
  %1524 = vmatpush1.msra.mxu0 0.0
  %1525 = vmatprep.subr.mxu0 0.0
  %1526 = vmatpush1.msra.mxu0 0.0
  %1527 = vmatprep.subr.mxu0 0.0
  %1528 = vmatpush1.msra.mxu0 0.0
  %1529 = vmatprep.subr.mxu0 0.0
  %1530 = vmatpush1.msra.mxu0 0.0
  %1531 = vmatprep.subr.mxu0 0.0
  %1532 = vmatpush1.msra.mxu0 0.0
  %1533 = vmatprep.subr.mxu0 0.0
  %1534 = vmatpush1.msra.mxu0 0.0
  %1535 = vmatprep.subr.mxu0 0.0
  %1536 = vmatpush1.msra.mxu0 0.0
  %1537 = vmatprep.subr.mxu0 0.0
  %1538 = vmatpush1.msra.mxu0 0.0
  %1539 = vmatprep.mubr.f32.mxu0 0.0
  %1540 = vmatmul.mubr.f32.gmra.mrb[0].mxu0 %v1294
  %v1541 = vpop.f32.mrb[0].mxu0
  %v1542 = vadd.f32 %v1472, %v1541
  %v1543 = vpop.f32.mrb[0].mxu0
  %1544 = vdwg.mxu0
  %s1545 = scalar_lea.vmem %s7, 16
  %v1546 = vld [vmem:[%s1545] sm:$0xff]
  %v1548 = vsel %vm1223, %v1546, 0
  %1550 = vmatprep.subr.mxu0 0.0
  %1551 = vmatpush1.msra.mxu0 %v1220
  %1552 = vmatprep.subr.mxu0 0.0
  %1553 = vmatpush1.msra.mxu0 %v1221
  %1554 = vmatprep.subr.mxu0 0.0
  %1555 = vmatpush1.msra.mxu0 0.0
  %1556 = vmatprep.subr.mxu0 0.0
  %1557 = vmatpush1.msra.mxu0 0.0
  %1558 = vmatprep.subr.mxu0 0.0
  %1559 = vmatpush1.msra.mxu0 0.0
  %1560 = vmatprep.subr.mxu0 0.0
  %1561 = vmatpush1.msra.mxu0 0.0
  %1562 = vmatprep.subr.mxu0 0.0
  %1563 = vmatpush1.msra.mxu0 0.0
  %1564 = vmatprep.subr.mxu0 0.0
  %1565 = vmatpush1.msra.mxu0 0.0
  %1566 = vmatprep.subr.mxu0 0.0
  %1567 = vmatpush1.msra.mxu0 0.0
  %1568 = vmatprep.subr.mxu0 0.0
  %1569 = vmatpush1.msra.mxu0 0.0
  %1570 = vmatprep.subr.mxu0 0.0
  %1571 = vmatpush1.msra.mxu0 0.0
  %1572 = vmatprep.subr.mxu0 0.0
  %1573 = vmatpush1.msra.mxu0 0.0
  %1574 = vmatprep.subr.mxu0 0.0
  %1575 = vmatpush1.msra.mxu0 0.0
  %1576 = vmatprep.subr.mxu0 0.0
  %1577 = vmatpush1.msra.mxu0 0.0
  %1578 = vmatprep.subr.mxu0 0.0
  %1579 = vmatpush1.msra.mxu0 0.0
  %1580 = vmatprep.subr.mxu0 0.0
  %1581 = vmatpush1.msra.mxu0 0.0
  %1582 = vmatprep.subr.mxu0 0.0
  %1583 = vmatpush1.msra.mxu0 0.0
  %1584 = vmatprep.subr.mxu0 0.0
  %1585 = vmatpush1.msra.mxu0 0.0
  %1586 = vmatprep.subr.mxu0 0.0
  %1587 = vmatpush1.msra.mxu0 0.0
  %1588 = vmatprep.subr.mxu0 0.0
  %1589 = vmatpush1.msra.mxu0 0.0
  %1590 = vmatprep.subr.mxu0 0.0
  %1591 = vmatpush1.msra.mxu0 0.0
  %1592 = vmatprep.subr.mxu0 0.0
  %1593 = vmatpush1.msra.mxu0 0.0
  %1594 = vmatprep.subr.mxu0 0.0
  %1595 = vmatpush1.msra.mxu0 0.0
  %1596 = vmatprep.subr.mxu0 0.0
  %1597 = vmatpush1.msra.mxu0 0.0
  %1598 = vmatprep.subr.mxu0 0.0
  %1599 = vmatpush1.msra.mxu0 0.0
  %1600 = vmatprep.subr.mxu0 0.0
  %1601 = vmatpush1.msra.mxu0 0.0
  %1602 = vmatprep.subr.mxu0 0.0
  %1603 = vmatpush1.msra.mxu0 0.0
  %1604 = vmatprep.subr.mxu0 0.0
  %1605 = vmatpush1.msra.mxu0 0.0
  %1606 = vmatprep.subr.mxu0 0.0
  %1607 = vmatpush1.msra.mxu0 0.0
  %1608 = vmatprep.subr.mxu0 0.0
  %1609 = vmatpush1.msra.mxu0 0.0
  %1610 = vmatprep.subr.mxu0 0.0
  %1611 = vmatpush1.msra.mxu0 0.0
  %1612 = vmatprep.subr.mxu0 0.0
  %1613 = vmatpush1.msra.mxu0 0.0
  %1614 = vmatprep.mubr.f32.mxu0 0.0
  %1615 = vmatmul.mubr.f32.gmra.mrb[0].mxu0 %v1548
  %v1616 = vpop.f32.mrb[0].mxu0
  %v1617 = vadd.f32 0.0, %v1616
  %v1618 = vpop.f32.mrb[0].mxu0
  %1619 = vdwg.mxu0
  %s1620 = scalar_lea.vmem %s8, 256
  %v1621 = vld [vmem:[%s1620] sm:$0xff]
  %v1622 = vld [vmem:[%s1620 + $0x8] sm:$0xff]
  %v1623 = vld [vmem:[%s1620 + $0x10] sm:$0xff]
  %v1624 = vld [vmem:[%s1620 + $0x18] sm:$0xff]
  %v1625 = vld [vmem:[%s1620 + $0x20] sm:$0xff]
  %v1626 = vld [vmem:[%s1620 + $0x28] sm:$0xff]
  %v1627 = vld [vmem:[%s1620 + $0x30] sm:$0xff]
  %v1628 = vld [vmem:[%s1620 + $0x38] sm:$0xff]
  %v1629 = vld [vmem:[%s1620 + $0x40] sm:$0xff]
  %v1630 = vld [vmem:[%s1620 + $0x48] sm:$0xff]
  %v1631 = vld [vmem:[%s1620 + $0x50] sm:$0xff]
  %v1632 = vld [vmem:[%s1620 + $0x58] sm:$0xff]
  %v1633 = vld [vmem:[%s1620 + $0x60] sm:$0xff]
  %v1634 = vld [vmem:[%s1620 + $0x68] sm:$0xff]
  %v1635 = vld [vmem:[%s1620 + $0x70] sm:$0xff]
  %v1636 = vld [vmem:[%s1620 + $0x78] sm:$0xff]
  %1637 = vmatprep.subr.mxu0 0.0
  %1638 = vmatpush1.msra.mxu0 %v1621
  %1639 = vmatprep.subr.mxu0 0.0
  %1640 = vmatpush1.msra.mxu0 %v1622
  %1641 = vmatprep.subr.mxu0 0.0
  %1642 = vmatpush1.msra.mxu0 %v1623
  %1643 = vmatprep.subr.mxu0 0.0
  %1644 = vmatpush1.msra.mxu0 %v1624
  %1645 = vmatprep.subr.mxu0 0.0
  %1646 = vmatpush1.msra.mxu0 %v1625
  %1647 = vmatprep.subr.mxu0 0.0
  %1648 = vmatpush1.msra.mxu0 %v1626
  %1649 = vmatprep.subr.mxu0 0.0
  %1650 = vmatpush1.msra.mxu0 %v1627
  %1651 = vmatprep.subr.mxu0 0.0
  %1652 = vmatpush1.msra.mxu0 %v1628
  %1653 = vmatprep.subr.mxu0 0.0
  %1654 = vmatpush1.msra.mxu0 %v1629
  %1655 = vmatprep.subr.mxu0 0.0
  %1656 = vmatpush1.msra.mxu0 %v1630
  %1657 = vmatprep.subr.mxu0 0.0
  %1658 = vmatpush1.msra.mxu0 %v1631
  %1659 = vmatprep.subr.mxu0 0.0
  %1660 = vmatpush1.msra.mxu0 %v1632
  %1661 = vmatprep.subr.mxu0 0.0
  %1662 = vmatpush1.msra.mxu0 %v1633
  %1663 = vmatprep.subr.mxu0 0.0
  %1664 = vmatpush1.msra.mxu0 %v1634
  %1665 = vmatprep.subr.mxu0 0.0
  %1666 = vmatpush1.msra.mxu0 %v1635
  %1667 = vmatprep.subr.mxu0 0.0
  %1668 = vmatpush1.msra.mxu0 %v1636
  %1669 = vmatprep.subr.mxu0 0.0
  %1670 = vmatpush1.msra.mxu0 0.0
  %1671 = vmatprep.subr.mxu0 0.0
  %1672 = vmatpush1.msra.mxu0 0.0
  %1673 = vmatprep.subr.mxu0 0.0
  %1674 = vmatpush1.msra.mxu0 0.0
  %1675 = vmatprep.subr.mxu0 0.0
  %1676 = vmatpush1.msra.mxu0 0.0
  %1677 = vmatprep.subr.mxu0 0.0
  %1678 = vmatpush1.msra.mxu0 0.0
  %1679 = vmatprep.subr.mxu0 0.0
  %1680 = vmatpush1.msra.mxu0 0.0
  %1681 = vmatprep.subr.mxu0 0.0
  %1682 = vmatpush1.msra.mxu0 0.0
  %1683 = vmatprep.subr.mxu0 0.0
  %1684 = vmatpush1.msra.mxu0 0.0
  %1685 = vmatprep.subr.mxu0 0.0
  %1686 = vmatpush1.msra.mxu0 0.0
  %1687 = vmatprep.subr.mxu0 0.0
  %1688 = vmatpush1.msra.mxu0 0.0
  %1689 = vmatprep.subr.mxu0 0.0
  %1690 = vmatpush1.msra.mxu0 0.0
  %1691 = vmatprep.subr.mxu0 0.0
  %1692 = vmatpush1.msra.mxu0 0.0
  %1693 = vmatprep.subr.mxu0 0.0
  %1694 = vmatpush1.msra.mxu0 0.0
  %1695 = vmatprep.subr.mxu0 0.0
  %1696 = vmatpush1.msra.mxu0 0.0
  %1697 = vmatprep.subr.mxu0 0.0
  %1698 = vmatpush1.msra.mxu0 0.0
  %1699 = vmatprep.subr.mxu0 0.0
  %1700 = vmatpush1.msra.mxu0 0.0
  %1701 = vmatprep.mubr.f32.mxu0 0.0
  %1702 = vmatmul.mubr.f32.gmra.mrb[0].mxu0 %v1617
  %v1703 = vpop.f32.mrb[0].mxu0
  %v1704 = vadd.f32 0.0, %v1703
  %v1705 = vpop.f32.mrb[0].mxu0
  %1706 = vdwg.mxu0
  %v1707 = vadd.f32 %v1542, %v1704
  %v1708 = vld [vmem:[%s9] sm:$0x1]
  %v1710 = vlaneseq
  %v1711 = vshrl.u32 %v1710, 7
  %v1712 = vsub.s32 0, %v1711
  %v1713 = vrot.slane %v1708, %v1712
  %v1715 = vadd.f32 %v1707, %v1713
  %v1716 = vmax.f32 %v1715, 0.0
  %v1717 = vld [vmem:[%s10] sm:$0xff]
  %vm1718 = vcmask 64512
  %v1720 = vsel %vm1718, %v1717, 0
  %1722 = vmatprep.subr.mxu0 0.0
  %1723 = vmatpush1.msra.mxu0 %v1716
  %1724 = vmatprep.subr.mxu0 0.0
  %1725 = vmatpush1.msra.mxu0 0.0
  %1726 = vmatprep.subr.mxu0 0.0
  %1727 = vmatpush1.msra.mxu0 0.0
  %1728 = vmatprep.subr.mxu0 0.0
  %1729 = vmatpush1.msra.mxu0 0.0
  %1730 = vmatprep.subr.mxu0 0.0
  %1731 = vmatpush1.msra.mxu0 0.0
  %1732 = vmatprep.subr.mxu0 0.0
  %1733 = vmatpush1.msra.mxu0 0.0
  %1734 = vmatprep.subr.mxu0 0.0
  %1735 = vmatpush1.msra.mxu0 0.0
  %1736 = vmatprep.subr.mxu0 0.0
  %1737 = vmatpush1.msra.mxu0 0.0
  %1738 = vmatprep.subr.mxu0 0.0
  %1739 = vmatpush1.msra.mxu0 0.0
  %1740 = vmatprep.subr.mxu0 0.0
  %1741 = vmatpush1.msra.mxu0 0.0
  %1742 = vmatprep.subr.mxu0 0.0
  %1743 = vmatpush1.msra.mxu0 0.0
  %1744 = vmatprep.subr.mxu0 0.0
  %1745 = vmatpush1.msra.mxu0 0.0
  %1746 = vmatprep.subr.mxu0 0.0
  %1747 = vmatpush1.msra.mxu0 0.0
  %1748 = vmatprep.subr.mxu0 0.0
  %1749 = vmatpush1.msra.mxu0 0.0
  %1750 = vmatprep.subr.mxu0 0.0
  %1751 = vmatpush1.msra.mxu0 0.0
  %1752 = vmatprep.subr.mxu0 0.0
  %1753 = vmatpush1.msra.mxu0 0.0
  %1754 = vmatprep.subr.mxu0 0.0
  %1755 = vmatpush1.msra.mxu0 0.0
  %1756 = vmatprep.subr.mxu0 0.0
  %1757 = vmatpush1.msra.mxu0 0.0
  %1758 = vmatprep.subr.mxu0 0.0
  %1759 = vmatpush1.msra.mxu0 0.0
  %1760 = vmatprep.subr.mxu0 0.0
  %1761 = vmatpush1.msra.mxu0 0.0
  %1762 = vmatprep.subr.mxu0 0.0
  %1763 = vmatpush1.msra.mxu0 0.0
  %1764 = vmatprep.subr.mxu0 0.0
  %1765 = vmatpush1.msra.mxu0 0.0
  %1766 = vmatprep.subr.mxu0 0.0
  %1767 = vmatpush1.msra.mxu0 0.0
  %1768 = vmatprep.subr.mxu0 0.0
  %1769 = vmatpush1.msra.mxu0 0.0
  %1770 = vmatprep.subr.mxu0 0.0
  %1771 = vmatpush1.msra.mxu0 0.0
  %1772 = vmatprep.subr.mxu0 0.0
  %1773 = vmatpush1.msra.mxu0 0.0
  %1774 = vmatprep.subr.mxu0 0.0
  %1775 = vmatpush1.msra.mxu0 0.0
  %1776 = vmatprep.subr.mxu0 0.0
  %1777 = vmatpush1.msra.mxu0 0.0
  %1778 = vmatprep.subr.mxu0 0.0
  %1779 = vmatpush1.msra.mxu0 0.0
  %1780 = vmatprep.subr.mxu0 0.0
  %1781 = vmatpush1.msra.mxu0 0.0
  %1782 = vmatprep.subr.mxu0 0.0
  %1783 = vmatpush1.msra.mxu0 0.0
  %1784 = vmatprep.subr.mxu0 0.0
  %1785 = vmatpush1.msra.mxu0 0.0
  %1786 = vmatprep.mubr.f32.mxu0 0.0
  %1787 = vmatmul.mubr.f32.gmra.mrb[0].mxu0 %v1720
  %v1788 = vpop.f32.mrb[0].mxu0
  %v1789 = vadd.f32 0.0, %v1788
  %v1790 = vpop.f32.mrb[0].mxu0
  %1791 = vdwg.mxu0
  %v1792 = vld [vmem:[%s11] sm:$0xff]
  %v1793 = vld [vmem:[%s11 + $0x8] sm:$0xff]
  %v1794 = vld [vmem:[%s11 + $0x10] sm:$0xff]
  %v1795 = vld [vmem:[%s11 + $0x18] sm:$0xff]
  %v1796 = vld [vmem:[%s11 + $0x20] sm:$0xff]
  %v1797 = vld [vmem:[%s11 + $0x28] sm:$0xff]
  %v1798 = vld [vmem:[%s11 + $0x30] sm:$0xff]
  %v1799 = vld [vmem:[%s11 + $0x38] sm:$0xff]
  %v1800 = vld [vmem:[%s11 + $0x40] sm:$0xff]
  %v1801 = vld [vmem:[%s11 + $0x48] sm:$0xff]
  %v1802 = vld [vmem:[%s11 + $0x50] sm:$0xff]
  %v1803 = vld [vmem:[%s11 + $0x58] sm:$0xff]
  %v1804 = vld [vmem:[%s11 + $0x60] sm:$0xff]
  %v1805 = vld [vmem:[%s11 + $0x68] sm:$0xff]
  %v1806 = vld [vmem:[%s11 + $0x70] sm:$0xff]
  %v1807 = vld [vmem:[%s11 + $0x78] sm:$0xff]
  %s1808 = scalar_lea.vmem %s10, 8
  %v1809 = vld [vmem:[%s1808] sm:$0xff]
  %v1811 = vsel %vm1718, %v1809, 0
  %1813 = vmatprep.subr.mxu0 0.0
  %1814 = vmatpush1.msra.mxu0 %v1716
  %1815 = vmatprep.subr.mxu0 0.0
  %1816 = vmatpush1.msra.mxu0 0.0
  %1817 = vmatprep.subr.mxu0 0.0
  %1818 = vmatpush1.msra.mxu0 0.0
  %1819 = vmatprep.subr.mxu0 0.0
  %1820 = vmatpush1.msra.mxu0 0.0
  %1821 = vmatprep.subr.mxu0 0.0
  %1822 = vmatpush1.msra.mxu0 0.0
  %1823 = vmatprep.subr.mxu0 0.0
  %1824 = vmatpush1.msra.mxu0 0.0
  %1825 = vmatprep.subr.mxu0 0.0
  %1826 = vmatpush1.msra.mxu0 0.0
  %1827 = vmatprep.subr.mxu0 0.0
  %1828 = vmatpush1.msra.mxu0 0.0
  %1829 = vmatprep.subr.mxu0 0.0
  %1830 = vmatpush1.msra.mxu0 0.0
  %1831 = vmatprep.subr.mxu0 0.0
  %1832 = vmatpush1.msra.mxu0 0.0
  %1833 = vmatprep.subr.mxu0 0.0
  %1834 = vmatpush1.msra.mxu0 0.0
  %1835 = vmatprep.subr.mxu0 0.0
  %1836 = vmatpush1.msra.mxu0 0.0
  %1837 = vmatprep.subr.mxu0 0.0
  %1838 = vmatpush1.msra.mxu0 0.0
  %1839 = vmatprep.subr.mxu0 0.0
  %1840 = vmatpush1.msra.mxu0 0.0
  %1841 = vmatprep.subr.mxu0 0.0
  %1842 = vmatpush1.msra.mxu0 0.0
  %1843 = vmatprep.subr.mxu0 0.0
  %1844 = vmatpush1.msra.mxu0 0.0
  %1845 = vmatprep.subr.mxu0 0.0
  %1846 = vmatpush1.msra.mxu0 0.0
  %1847 = vmatprep.subr.mxu0 0.0
  %1848 = vmatpush1.msra.mxu0 0.0
  %1849 = vmatprep.subr.mxu0 0.0
  %1850 = vmatpush1.msra.mxu0 0.0
  %1851 = vmatprep.subr.mxu0 0.0
  %1852 = vmatpush1.msra.mxu0 0.0
  %1853 = vmatprep.subr.mxu0 0.0
  %1854 = vmatpush1.msra.mxu0 0.0
  %1855 = vmatprep.subr.mxu0 0.0
  %1856 = vmatpush1.msra.mxu0 0.0
  %1857 = vmatprep.subr.mxu0 0.0
  %1858 = vmatpush1.msra.mxu0 0.0
  %1859 = vmatprep.subr.mxu0 0.0
  %1860 = vmatpush1.msra.mxu0 0.0
  %1861 = vmatprep.subr.mxu0 0.0
  %1862 = vmatpush1.msra.mxu0 0.0
  %1863 = vmatprep.subr.mxu0 0.0
  %1864 = vmatpush1.msra.mxu0 0.0
  %1865 = vmatprep.subr.mxu0 0.0
  %1866 = vmatpush1.msra.mxu0 0.0
  %1867 = vmatprep.subr.mxu0 0.0
  %1868 = vmatpush1.msra.mxu0 0.0
  %1869 = vmatprep.subr.mxu0 0.0
  %1870 = vmatpush1.msra.mxu0 0.0
  %1871 = vmatprep.subr.mxu0 0.0
  %1872 = vmatpush1.msra.mxu0 0.0
  %1873 = vmatprep.subr.mxu0 0.0
  %1874 = vmatpush1.msra.mxu0 0.0
  %1875 = vmatprep.subr.mxu0 0.0
  %1876 = vmatpush1.msra.mxu0 0.0
  %1877 = vmatprep.mubr.f32.mxu0 0.0
  %1878 = vmatmul.mubr.f32.gmra.mrb[0].mxu0 %v1811
  %v1879 = vpop.f32.mrb[0].mxu0
  %v1880 = vadd.f32 0.0, %v1879
  %v1881 = vpop.f32.mrb[0].mxu0
  %1882 = vdwg.mxu0
  %s1883 = scalar_lea.vmem %s11, 128
  %v1884 = vld [vmem:[%s1883] sm:$0xff]
  %v1885 = vld [vmem:[%s1883 + $0x8] sm:$0xff]
  %v1886 = vld [vmem:[%s1883 + $0x10] sm:$0xff]
  %v1887 = vld [vmem:[%s1883 + $0x18] sm:$0xff]
  %v1888 = vld [vmem:[%s1883 + $0x20] sm:$0xff]
  %v1889 = vld [vmem:[%s1883 + $0x28] sm:$0xff]
  %v1890 = vld [vmem:[%s1883 + $0x30] sm:$0xff]
  %v1891 = vld [vmem:[%s1883 + $0x38] sm:$0xff]
  %v1892 = vld [vmem:[%s1883 + $0x40] sm:$0xff]
  %v1893 = vld [vmem:[%s1883 + $0x48] sm:$0xff]
  %v1894 = vld [vmem:[%s1883 + $0x50] sm:$0xff]
  %v1895 = vld [vmem:[%s1883 + $0x58] sm:$0xff]
  %v1896 = vld [vmem:[%s1883 + $0x60] sm:$0xff]
  %v1897 = vld [vmem:[%s1883 + $0x68] sm:$0xff]
  %v1898 = vld [vmem:[%s1883 + $0x70] sm:$0xff]
  %v1899 = vld [vmem:[%s1883 + $0x78] sm:$0xff]
  %1900 = vmatprep.subr.mxu0 0.0
  %1901 = vmatpush1.msra.mxu0 %v1884
  %1902 = vmatprep.subr.mxu0 0.0
  %1903 = vmatpush1.msra.mxu0 %v1885
  %1904 = vmatprep.subr.mxu0 0.0
  %1905 = vmatpush1.msra.mxu0 %v1886
  %1906 = vmatprep.subr.mxu0 0.0
  %1907 = vmatpush1.msra.mxu0 %v1887
  %1908 = vmatprep.subr.mxu0 0.0
  %1909 = vmatpush1.msra.mxu0 %v1888
  %1910 = vmatprep.subr.mxu0 0.0
  %1911 = vmatpush1.msra.mxu0 %v1889
  %1912 = vmatprep.subr.mxu0 0.0
  %1913 = vmatpush1.msra.mxu0 %v1890
  %1914 = vmatprep.subr.mxu0 0.0
  %1915 = vmatpush1.msra.mxu0 %v1891
  %1916 = vmatprep.subr.mxu0 0.0
  %1917 = vmatpush1.msra.mxu0 %v1892
  %1918 = vmatprep.subr.mxu0 0.0
  %1919 = vmatpush1.msra.mxu0 %v1893
  %1920 = vmatprep.subr.mxu0 0.0
  %1921 = vmatpush1.msra.mxu0 %v1894
  %1922 = vmatprep.subr.mxu0 0.0
  %1923 = vmatpush1.msra.mxu0 %v1895
  %1924 = vmatprep.subr.mxu0 0.0
  %1925 = vmatpush1.msra.mxu0 %v1896
  %1926 = vmatprep.subr.mxu0 0.0
  %1927 = vmatpush1.msra.mxu0 %v1897
  %1928 = vmatprep.subr.mxu0 0.0
  %1929 = vmatpush1.msra.mxu0 %v1898
  %1930 = vmatprep.subr.mxu0 0.0
  %1931 = vmatpush1.msra.mxu0 %v1899
  %1932 = vmatprep.subr.mxu0 0.0
  %1933 = vmatpush1.msra.mxu0 0.0
  %1934 = vmatprep.subr.mxu0 0.0
  %1935 = vmatpush1.msra.mxu0 0.0
  %1936 = vmatprep.subr.mxu0 0.0
  %1937 = vmatpush1.msra.mxu0 0.0
  %1938 = vmatprep.subr.mxu0 0.0
  %1939 = vmatpush1.msra.mxu0 0.0
  %1940 = vmatprep.subr.mxu0 0.0
  %1941 = vmatpush1.msra.mxu0 0.0
  %1942 = vmatprep.subr.mxu0 0.0
  %1943 = vmatpush1.msra.mxu0 0.0
  %1944 = vmatprep.subr.mxu0 0.0
  %1945 = vmatpush1.msra.mxu0 0.0
  %1946 = vmatprep.subr.mxu0 0.0
  %1947 = vmatpush1.msra.mxu0 0.0
  %1948 = vmatprep.subr.mxu0 0.0
  %1949 = vmatpush1.msra.mxu0 0.0
  %1950 = vmatprep.subr.mxu0 0.0
  %1951 = vmatpush1.msra.mxu0 0.0
  %1952 = vmatprep.subr.mxu0 0.0
  %1953 = vmatpush1.msra.mxu0 0.0
  %1954 = vmatprep.subr.mxu0 0.0
  %1955 = vmatpush1.msra.mxu0 0.0
  %1956 = vmatprep.subr.mxu0 0.0
  %1957 = vmatpush1.msra.mxu0 0.0
  %1958 = vmatprep.subr.mxu0 0.0
  %1959 = vmatpush1.msra.mxu0 0.0
  %1960 = vmatprep.subr.mxu0 0.0
  %1961 = vmatpush1.msra.mxu0 0.0
  %1962 = vmatprep.subr.mxu0 0.0
  %1963 = vmatpush1.msra.mxu0 0.0
  %1964 = vmatprep.mubr.f32.mxu0 0.0
  %1965 = vmatmul.mubr.f32.gmra.mrb[0].mxu0 %v1880
  %v1966 = vpop.f32.mrb[0].mxu0
  %v1967 = vadd.f32 0.0, %v1966
  %v1968 = vpop.f32.mrb[0].mxu0
  %1969 = vdwg.mxu0
  %1970 = vmatprep.subr.mxu0 0.0
  %1971 = vmatpush1.msra.mxu0 %v1792
  %1972 = vmatprep.subr.mxu0 0.0
  %1973 = vmatpush1.msra.mxu0 %v1793
  %1974 = vmatprep.subr.mxu0 0.0
  %1975 = vmatpush1.msra.mxu0 %v1794
  %1976 = vmatprep.subr.mxu0 0.0
  %1977 = vmatpush1.msra.mxu0 %v1795
  %1978 = vmatprep.subr.mxu0 0.0
  %1979 = vmatpush1.msra.mxu0 %v1796
  %1980 = vmatprep.subr.mxu0 0.0
  %1981 = vmatpush1.msra.mxu0 %v1797
  %1982 = vmatprep.subr.mxu0 0.0
  %1983 = vmatpush1.msra.mxu0 %v1798
  %1984 = vmatprep.subr.mxu0 0.0
  %1985 = vmatpush1.msra.mxu0 %v1799
  %1986 = vmatprep.subr.mxu0 0.0
  %1987 = vmatpush1.msra.mxu0 %v1800
  %1988 = vmatprep.subr.mxu0 0.0
  %1989 = vmatpush1.msra.mxu0 %v1801
  %1990 = vmatprep.subr.mxu0 0.0
  %1991 = vmatpush1.msra.mxu0 %v1802
  %1992 = vmatprep.subr.mxu0 0.0
  %1993 = vmatpush1.msra.mxu0 %v1803
  %1994 = vmatprep.subr.mxu0 0.0
  %1995 = vmatpush1.msra.mxu0 %v1804
  %1996 = vmatprep.subr.mxu0 0.0
  %1997 = vmatpush1.msra.mxu0 %v1805
  %1998 = vmatprep.subr.mxu0 0.0
  %1999 = vmatpush1.msra.mxu0 %v1806
  %2000 = vmatprep.subr.mxu0 0.0
  %2001 = vmatpush1.msra.mxu0 %v1807
  %2002 = vmatprep.subr.mxu0 0.0
  %2003 = vmatpush1.msra.mxu0 0.0
  %2004 = vmatprep.subr.mxu0 0.0
  %2005 = vmatpush1.msra.mxu0 0.0
  %2006 = vmatprep.subr.mxu0 0.0
  %2007 = vmatpush1.msra.mxu0 0.0
  %2008 = vmatprep.subr.mxu0 0.0
  %2009 = vmatpush1.msra.mxu0 0.0
  %2010 = vmatprep.subr.mxu0 0.0
  %2011 = vmatpush1.msra.mxu0 0.0
  %2012 = vmatprep.subr.mxu0 0.0
  %2013 = vmatpush1.msra.mxu0 0.0
  %2014 = vmatprep.subr.mxu0 0.0
  %2015 = vmatpush1.msra.mxu0 0.0
  %2016 = vmatprep.subr.mxu0 0.0
  %2017 = vmatpush1.msra.mxu0 0.0
  %2018 = vmatprep.subr.mxu0 0.0
  %2019 = vmatpush1.msra.mxu0 0.0
  %2020 = vmatprep.subr.mxu0 0.0
  %2021 = vmatpush1.msra.mxu0 0.0
  %2022 = vmatprep.subr.mxu0 0.0
  %2023 = vmatpush1.msra.mxu0 0.0
  %2024 = vmatprep.subr.mxu0 0.0
  %2025 = vmatpush1.msra.mxu0 0.0
  %2026 = vmatprep.subr.mxu0 0.0
  %2027 = vmatpush1.msra.mxu0 0.0
  %2028 = vmatprep.subr.mxu0 0.0
  %2029 = vmatpush1.msra.mxu0 0.0
  %2030 = vmatprep.subr.mxu0 0.0
  %2031 = vmatpush1.msra.mxu0 0.0
  %2032 = vmatprep.subr.mxu0 0.0
  %2033 = vmatpush1.msra.mxu0 0.0
  %2034 = vmatprep.mubr.f32.mxu0 0.0
  %2035 = vmatmul.mubr.f32.gmra.mrb[0].mxu0 %v1789
  %v2036 = vpop.f32.mrb[0].mxu0
  %v2037 = vadd.f32 %v1967, %v2036
  %v2038 = vpop.f32.mrb[0].mxu0
  %2039 = vdwg.mxu0
  %s2040 = scalar_lea.vmem %s10, 16
  %v2041 = vld [vmem:[%s2040] sm:$0xff]
  %v2043 = vsel %vm1718, %v2041, 0
  %2045 = vmatprep.subr.mxu0 0.0
  %2046 = vmatpush1.msra.mxu0 %v1716
  %2047 = vmatprep.subr.mxu0 0.0
  %2048 = vmatpush1.msra.mxu0 0.0
  %2049 = vmatprep.subr.mxu0 0.0
  %2050 = vmatpush1.msra.mxu0 0.0
  %2051 = vmatprep.subr.mxu0 0.0
  %2052 = vmatpush1.msra.mxu0 0.0
  %2053 = vmatprep.subr.mxu0 0.0
  %2054 = vmatpush1.msra.mxu0 0.0
  %2055 = vmatprep.subr.mxu0 0.0
  %2056 = vmatpush1.msra.mxu0 0.0
  %2057 = vmatprep.subr.mxu0 0.0
  %2058 = vmatpush1.msra.mxu0 0.0
  %2059 = vmatprep.subr.mxu0 0.0
  %2060 = vmatpush1.msra.mxu0 0.0
  %2061 = vmatprep.subr.mxu0 0.0
  %2062 = vmatpush1.msra.mxu0 0.0
  %2063 = vmatprep.subr.mxu0 0.0
  %2064 = vmatpush1.msra.mxu0 0.0
  %2065 = vmatprep.subr.mxu0 0.0
  %2066 = vmatpush1.msra.mxu0 0.0
  %2067 = vmatprep.subr.mxu0 0.0
  %2068 = vmatpush1.msra.mxu0 0.0
  %2069 = vmatprep.subr.mxu0 0.0
  %2070 = vmatpush1.msra.mxu0 0.0
  %2071 = vmatprep.subr.mxu0 0.0
  %2072 = vmatpush1.msra.mxu0 0.0
  %2073 = vmatprep.subr.mxu0 0.0
  %2074 = vmatpush1.msra.mxu0 0.0
  %2075 = vmatprep.subr.mxu0 0.0
  %2076 = vmatpush1.msra.mxu0 0.0
  %2077 = vmatprep.subr.mxu0 0.0
  %2078 = vmatpush1.msra.mxu0 0.0
  %2079 = vmatprep.subr.mxu0 0.0
  %2080 = vmatpush1.msra.mxu0 0.0
  %2081 = vmatprep.subr.mxu0 0.0
  %2082 = vmatpush1.msra.mxu0 0.0
  %2083 = vmatprep.subr.mxu0 0.0
  %2084 = vmatpush1.msra.mxu0 0.0
  %2085 = vmatprep.subr.mxu0 0.0
  %2086 = vmatpush1.msra.mxu0 0.0
  %2087 = vmatprep.subr.mxu0 0.0
  %2088 = vmatpush1.msra.mxu0 0.0
  %2089 = vmatprep.subr.mxu0 0.0
  %2090 = vmatpush1.msra.mxu0 0.0
  %2091 = vmatprep.subr.mxu0 0.0
  %2092 = vmatpush1.msra.mxu0 0.0
  %2093 = vmatprep.subr.mxu0 0.0
  %2094 = vmatpush1.msra.mxu0 0.0
  %2095 = vmatprep.subr.mxu0 0.0
  %2096 = vmatpush1.msra.mxu0 0.0
  %2097 = vmatprep.subr.mxu0 0.0
  %2098 = vmatpush1.msra.mxu0 0.0
  %2099 = vmatprep.subr.mxu0 0.0
  %2100 = vmatpush1.msra.mxu0 0.0
  %2101 = vmatprep.subr.mxu0 0.0
  %2102 = vmatpush1.msra.mxu0 0.0
  %2103 = vmatprep.subr.mxu0 0.0
  %2104 = vmatpush1.msra.mxu0 0.0
  %2105 = vmatprep.subr.mxu0 0.0
  %2106 = vmatpush1.msra.mxu0 0.0
  %2107 = vmatprep.subr.mxu0 0.0
  %2108 = vmatpush1.msra.mxu0 0.0
  %2109 = vmatprep.mubr.f32.mxu0 0.0
  %2110 = vmatmul.mubr.f32.gmra.mrb[0].mxu0 %v2043
  %v2111 = vpop.f32.mrb[0].mxu0
  %v2112 = vadd.f32 0.0, %v2111
  %v2113 = vpop.f32.mrb[0].mxu0
  %2114 = vdwg.mxu0
  %s2115 = scalar_lea.vmem %s11, 256
  %v2116 = vld [vmem:[%s2115] sm:$0xff]
  %v2117 = vld [vmem:[%s2115 + $0x8] sm:$0xff]
  %v2118 = vld [vmem:[%s2115 + $0x10] sm:$0xff]
  %v2119 = vld [vmem:[%s2115 + $0x18] sm:$0xff]
  %v2120 = vld [vmem:[%s2115 + $0x20] sm:$0xff]
  %v2121 = vld [vmem:[%s2115 + $0x28] sm:$0xff]
  %v2122 = vld [vmem:[%s2115 + $0x30] sm:$0xff]
  %v2123 = vld [vmem:[%s2115 + $0x38] sm:$0xff]
  %v2124 = vld [vmem:[%s2115 + $0x40] sm:$0xff]
  %v2125 = vld [vmem:[%s2115 + $0x48] sm:$0xff]
  %v2126 = vld [vmem:[%s2115 + $0x50] sm:$0xff]
  %v2127 = vld [vmem:[%s2115 + $0x58] sm:$0xff]
  %v2128 = vld [vmem:[%s2115 + $0x60] sm:$0xff]
  %v2129 = vld [vmem:[%s2115 + $0x68] sm:$0xff]
  %v2130 = vld [vmem:[%s2115 + $0x70] sm:$0xff]
  %v2131 = vld [vmem:[%s2115 + $0x78] sm:$0xff]
  %2132 = vmatprep.subr.mxu0 0.0
  %2133 = vmatpush1.msra.mxu0 %v2116
  %2134 = vmatprep.subr.mxu0 0.0
  %2135 = vmatpush1.msra.mxu0 %v2117
  %2136 = vmatprep.subr.mxu0 0.0
  %2137 = vmatpush1.msra.mxu0 %v2118
  %2138 = vmatprep.subr.mxu0 0.0
  %2139 = vmatpush1.msra.mxu0 %v2119
  %2140 = vmatprep.subr.mxu0 0.0
  %2141 = vmatpush1.msra.mxu0 %v2120
  %2142 = vmatprep.subr.mxu0 0.0
  %2143 = vmatpush1.msra.mxu0 %v2121
  %2144 = vmatprep.subr.mxu0 0.0
  %2145 = vmatpush1.msra.mxu0 %v2122
  %2146 = vmatprep.subr.mxu0 0.0
  %2147 = vmatpush1.msra.mxu0 %v2123
  %2148 = vmatprep.subr.mxu0 0.0
  %2149 = vmatpush1.msra.mxu0 %v2124
  %2150 = vmatprep.subr.mxu0 0.0
  %2151 = vmatpush1.msra.mxu0 %v2125
  %2152 = vmatprep.subr.mxu0 0.0
  %2153 = vmatpush1.msra.mxu0 %v2126
  %2154 = vmatprep.subr.mxu0 0.0
  %2155 = vmatpush1.msra.mxu0 %v2127
  %2156 = vmatprep.subr.mxu0 0.0
  %2157 = vmatpush1.msra.mxu0 %v2128
  %2158 = vmatprep.subr.mxu0 0.0
  %2159 = vmatpush1.msra.mxu0 %v2129
  %2160 = vmatprep.subr.mxu0 0.0
  %2161 = vmatpush1.msra.mxu0 %v2130
  %2162 = vmatprep.subr.mxu0 0.0
  %2163 = vmatpush1.msra.mxu0 %v2131
  %2164 = vmatprep.subr.mxu0 0.0
  %2165 = vmatpush1.msra.mxu0 0.0
  %2166 = vmatprep.subr.mxu0 0.0
  %2167 = vmatpush1.msra.mxu0 0.0
  %2168 = vmatprep.subr.mxu0 0.0
  %2169 = vmatpush1.msra.mxu0 0.0
  %2170 = vmatprep.subr.mxu0 0.0
  %2171 = vmatpush1.msra.mxu0 0.0
  %2172 = vmatprep.subr.mxu0 0.0
  %2173 = vmatpush1.msra.mxu0 0.0
  %2174 = vmatprep.subr.mxu0 0.0
  %2175 = vmatpush1.msra.mxu0 0.0
  %2176 = vmatprep.subr.mxu0 0.0
  %2177 = vmatpush1.msra.mxu0 0.0
  %2178 = vmatprep.subr.mxu0 0.0
  %2179 = vmatpush1.msra.mxu0 0.0
  %2180 = vmatprep.subr.mxu0 0.0
  %2181 = vmatpush1.msra.mxu0 0.0
  %2182 = vmatprep.subr.mxu0 0.0
  %2183 = vmatpush1.msra.mxu0 0.0
  %2184 = vmatprep.subr.mxu0 0.0
  %2185 = vmatpush1.msra.mxu0 0.0
  %2186 = vmatprep.subr.mxu0 0.0
  %2187 = vmatpush1.msra.mxu0 0.0
  %2188 = vmatprep.subr.mxu0 0.0
  %2189 = vmatpush1.msra.mxu0 0.0
  %2190 = vmatprep.subr.mxu0 0.0
  %2191 = vmatpush1.msra.mxu0 0.0
  %2192 = vmatprep.subr.mxu0 0.0
  %2193 = vmatpush1.msra.mxu0 0.0
  %2194 = vmatprep.subr.mxu0 0.0
  %2195 = vmatpush1.msra.mxu0 0.0
  %2196 = vmatprep.mubr.f32.mxu0 0.0
  %2197 = vmatmul.mubr.f32.gmra.mrb[0].mxu0 %v2112
  %v2198 = vpop.f32.mrb[0].mxu0
  %v2199 = vadd.f32 0.0, %v2198
  %v2200 = vpop.f32.mrb[0].mxu0
  %2201 = vdwg.mxu0
  %v2202 = vadd.f32 %v2037, %v2199
  %v2203 = vld [vmem:[%s12] sm:$0x1]
  %v2205 = vlaneseq
  %v2206 = vshrl.u32 %v2205, 7
  %v2207 = vsub.s32 0, %v2206
  %v2208 = vrot.slane %v2203, %v2207
  %v2210 = vadd.f32 %v2202, %v2208
  %v2211 = vmax.f32 %v2210, 0.0
  %2212 = vst [vmem:[%s13] sm:$0xff] %v2211
  // Predicated region
  $region54: #{simple_block_forward.1} parent=0 // pred_check
    _
  $region55: #{simple_block_forward.1} parent=0 // pred_check_branch
    %2214 = sbr.rel (0) target = $region57
  $region56: #{simple_block_forward.1} parent=0 // pred_region
    _
  $region57: #{simple_block_forward.1} parent=0 // pred_fallthru
    _
  // Predicated region
  $region58: #{simple_block_forward.1} parent=0 // pred_check
    _
  $region59: #{simple_block_forward.1} parent=0 // pred_check_branch
    %2216 = sbr.rel (0) target = $region61
  $region60: #{simple_block_forward.1} parent=0 // pred_region
    _
  $region61: #{simple_block_forward.1} parent=0 // pred_fallthru
    _

</llo_original>
